<compile_context>
chip_gen: v7x
topology: tpu7x:2x2x1
jax: 0.10.0
libtpu: 0.0.40
codegen_flags: <defaults>
</compile_context>

<pallas_src>
import functools
import math

import jax
import jax.numpy as jnp
from jax.experimental import pallas as pl
from jax.experimental.pallas import tpu as pltpu


# --------------------------------------------------------------------------
# Kernel
# --------------------------------------------------------------------------
def tcn_kernel(x_ref, cw_hbm, cb_hbm, dw_hbm, db_hbm,          # inputs
               o_ref,                                           # output
               cw_ref, cb_ref, dw_ref, db_ref,                  # resident weights
               hist_ref, buf_ref, xpad_ref, wsem,               # scratch
               *, level_cfgs, k, tl, max_pad, cp, c_in):
    """Fused TemporalConvNet forward for one (batch, L-tile) grid step.

    x_ref    : (1, TL, c_in)   raw-channel input tile (original dtype)
    c*_hbm   : stacked weights left in HBM (memory_space=pl.ANY)
    o_ref    : (1, TL, CP)     bf16 lane-padded output tile
    cw_ref   : (n_conv, k*CP, CP) bf16   resident conv weights (VMEM)
    cb_ref   : (n_conv, 1, CP)    f32    resident conv biases
    dw_ref   : (n_ds,   CP,  CP)  bf16   resident 1x1 downsample weights
    db_ref   : (n_ds,   1,   CP)  f32    resident 1x1 downsample biases
    hist_ref : (n_conv, MAX_PAD, CP) bf16  causal carry across L-tiles
    buf_ref  : (MAX_PAD + TL, CP)    bf16  staging buffer
    xpad_ref : (TL, CP) f32  zeroed staging for the lane pad of the raw input
    """
    mm_dtype = buf_ref.dtype

    # First L-tile of a batch element: load weights into VMEM (once, resident),
    # reset causal history (== the conv's causal left zero padding) and the
    # input lane-pad staging. Gated on l == 0 (not (b==0 and l==0)) so it
    # remains correct when the batch axis is megacore-sharded across cores.
    @pl.when(pl.program_id(1) == 0)
    def _():
        copies = [pltpu.make_async_copy(src, dst, wsem.at[i])
                  for i, (src, dst) in enumerate(
                      ((cw_hbm, cw_ref), (cb_hbm, cb_ref),
                       (dw_hbm, dw_ref), (db_hbm, db_ref)))]
        for c in copies:
            c.start()
        for c in copies:
            c.wait()
        hist_ref[...] = jnp.zeros_like(hist_ref)
        xpad_ref[...] = jnp.zeros_like(xpad_ref)

    def causal_conv(cur_mm, conv_idx, dilation):
        pad = dilation * (k - 1)
        # Stage [history | current tile] -- no zero-concat materialization.
        buf_ref[0:max_pad, :] = hist_ref[conv_idx]
        buf_ref[max_pad:max_pad + tl, :] = cur_mm
        # Carry the last MAX_PAD rows of this conv's input stream forward.
        hist_ref[conv_idx] = buf_ref[tl:tl + max_pad, :]
        # im2col over the k dilated taps -> one MXU matmul, f32 accumulation.
        start = max_pad - pad
        taps = [buf_ref[start + j * dilation: start + j * dilation + tl, :]
                for j in range(k)]
        im2col = jnp.concatenate(taps, axis=1)                  # (TL, k*CP) bf16
        acc = jnp.dot(im2col, cw_ref[conv_idx],
                      preferred_element_type=jnp.float32)
        return acc + cb_ref[conv_idx]                           # bias add in f32

    # ---- in-kernel lane pad of the raw-channel input tile (no host pad pass).
    if c_in < cp:
        # lanes [c_in, CP) of xpad stay 0 (zero weight rows make them inert).
        xpad_ref[:, 0:c_in] = x_ref[0].astype(jnp.float32)
        cur_f32 = xpad_ref[...]                                 # (TL, CP) f32
    else:
        cur_f32 = x_ref[0].astype(jnp.float32)
    cur_mm = cur_f32.astype(mm_dtype)

    ci = 0
    out = cur_f32
    for dilation, ds_idx in level_cfgs:                         # static unroll
        # conv1 -> chomp -> relu   (dropout1 == identity at inference)
        h = jnp.maximum(causal_conv(cur_mm, ci, dilation), 0.0)
        ci += 1
        # conv2 -> chomp -> relu   (dropout2 == identity at inference)
        h = jnp.maximum(causal_conv(h.astype(mm_dtype), ci, dilation), 0.0)
        ci += 1
        if ds_idx is not None:                                  # 1x1 downsample
            res = jnp.dot(cur_mm, dw_ref[ds_idx],
                          preferred_element_type=jnp.float32) + db_ref[ds_idx]
        else:                                                   # identity residual
            res = cur_f32                                       # f32, not bf16 recast
        out = jnp.maximum(h + res, 0.0)                         # f32
        cur_f32 = out
        cur_mm = out.astype(mm_dtype)

    o_ref[0] = out.astype(o_ref.dtype)                          # bf16 writeback


# --------------------------------------------------------------------------
# Host-side weight preparation (channel pad to lane width + im2col reshape).
# NOTE: weights must already have weight_norm folded in (w = g * v / ||v||);
# at torch init g == ||v||, so w == v.
# --------------------------------------------------------------------------
def _pad_conv_w(w, cp, mm_dtype):
    # torch Conv1d weight [C_out, C_in, k] -> im2col matrix [k*CP, CP]
    c_out, c_in, kk = w.shape
    wp = jnp.zeros((kk, cp, cp), jnp.float32)
    wp = wp.at[:, :c_in, :c_out].set(jnp.transpose(w, (2, 1, 0)))
    return wp.reshape(kk * cp, cp).astype(mm_dtype)


def _pad_dense_w(w, cp, mm_dtype):
    # 1x1 downsample weight [C_out, C_in] -> [CP, CP] used as x @ W
    c_out, c_in = w.shape
    wp = jnp.zeros((cp, cp), jnp.float32)
    wp = wp.at[:c_in, :c_out].set(w.T)
    return wp.astype(mm_dtype)


def _pad_bias(b, cp):
    return jnp.zeros((1, cp), jnp.float32).at[0, :b.shape[0]].set(
        b.astype(jnp.float32))


# --------------------------------------------------------------------------
# Wrapper
# --------------------------------------------------------------------------
def temporal_conv_net(x, params, *, kernel_size, tile_l=256,
                      mm_dtype=jnp.bfloat16):
    """Fused TCN forward.  x: [B, L, num_inputs] (TemporalConvNet layout).
    params: list of per-level dicts {w1, b1, w2, b2, wd|None, bd|None, dilation}
    in torch weight layouts, with weight_norm folded.  Returns
    [B, L, num_channels[-1]] in mm_dtype (bf16 by default)."""
    B, L, c_in0 = x.shape
    k = kernel_size
    LANE = 128

    widths = [c_in0] + [p["w1"].shape[0] for p in params]
    CP = max(LANE, -(-max(widths) // LANE) * LANE)              # lane-padded width

    TL = min(tile_l, -(-L // 8) * 8)                            # sequence tile
    TL = max(8, (TL // 8) * 8)
    Lp = -(-L // TL) * TL

    level_cfgs = []
    conv_ws, conv_bs, ds_ws, ds_bs = [], [], [], []
    in_c = c_in0
    max_pad = 0
    for p in params:
        out_c = p["w1"].shape[0]
        d = p["dilation"]
        has_ds = p.get("wd", None) is not None
        assert has_ds == (in_c != out_c), "downsample presence must match widths"
        max_pad = max(max_pad, d * (k - 1))
        conv_ws += [_pad_conv_w(p["w1"], CP, mm_dtype),
                    _pad_conv_w(p["w2"], CP, mm_dtype)]
        conv_bs += [_pad_bias(p["b1"], CP), _pad_bias(p["b2"], CP)]
        ds_idx = None
        if has_ds:
            ds_idx = len(ds_ws)
            ds_ws.append(_pad_dense_w(p["wd"], CP, mm_dtype))
            ds_bs.append(_pad_bias(p["bd"], CP))
        level_cfgs.append((d, ds_idx))
        in_c = out_c
    c_out_last = in_c
    MAX_PAD = max(8, -(-max_pad // 8) * 8)                      # sublane aligned

    if not ds_ws:                                               # keep shapes valid
        ds_ws.append(jnp.zeros((CP, CP), mm_dtype))
        ds_bs.append(jnp.zeros((1, CP), jnp.float32))

    conv_w = jnp.stack(conv_ws)                                 # (n_conv, k*CP, CP)
    conv_b = jnp.stack(conv_bs)                                 # (n_conv, 1, CP)
    ds_w = jnp.stack(ds_ws)                                     # (n_ds, CP, CP)
    ds_b = jnp.stack(ds_bs)                                     # (n_ds, 1, CP)

    # No host lane padding of the input; only pad the cheap sequence dim.
    if Lp != L:
        x = jnp.pad(x, ((0, 0), (0, Lp - L), (0, 0)))

    n_l = Lp // TL
    n_convs = 2 * len(params)

    # ---- derived VMEM budget: resident weights + double-buffered I/O + scratch
    def nbytes(a):
        return int(a.size) * a.dtype.itemsize
    mm_sz = jnp.dtype(mm_dtype).itemsize
    footprint = (nbytes(conv_w) + nbytes(conv_b) + nbytes(ds_w) + nbytes(ds_b)
                 + 2 * TL * max(c_in0, LANE) * x.dtype.itemsize  # input blocks x2
                 + 2 * TL * CP * mm_sz                           # output blocks x2
                 + n_convs * MAX_PAD * CP * mm_sz                # causal carry
                 + (MAX_PAD + TL) * CP * mm_sz                   # staging buffer
                 + TL * CP * 4)                                  # lane-pad staging
    try:
        vmem_cap = int(pltpu.get_tpu_info().vmem_capacity_bytes)
    except Exception:
        vmem_cap = 64 * 1024 * 1024                              # v7x-safe default
    vmem_limit = int(min(min(int(0.85 * vmem_cap), 100 << 20),
                         max(32 << 20, int(1.5 * footprint) + (8 << 20))))

    in_specs = [
        pl.BlockSpec((1, TL, c_in0), lambda b, l: (b, l, 0)),    # raw input tile
        pl.BlockSpec(memory_space=pl.ANY),                       # conv weights (HBM)
        pl.BlockSpec(memory_space=pl.ANY),                       # conv biases
        pl.BlockSpec(memory_space=pl.ANY),                       # 1x1 weights
        pl.BlockSpec(memory_space=pl.ANY),                       # 1x1 biases
    ]

    out_p = pl.pallas_call(
        functools.partial(tcn_kernel, level_cfgs=tuple(level_cfgs), k=k,
                          tl=TL, max_pad=MAX_PAD, cp=CP, c_in=c_in0),
        out_shape=jax.ShapeDtypeStruct((B, Lp, CP), mm_dtype),
        grid_spec=pltpu.PrefetchScalarGridSpec(
            num_scalar_prefetch=0,
            grid=(B, n_l),
            in_specs=in_specs,
            out_specs=pl.BlockSpec((1, TL, CP), lambda b, l: (b, l, 0)),
            scratch_shapes=[
                pltpu.VMEM(conv_w.shape, mm_dtype),      # resident conv weights
                pltpu.VMEM(conv_b.shape, jnp.float32),   # resident conv biases
                pltpu.VMEM(ds_w.shape, mm_dtype),        # resident 1x1 weights
                pltpu.VMEM(ds_b.shape, jnp.float32),     # resident 1x1 biases
                pltpu.VMEM((n_convs, MAX_PAD, CP), mm_dtype),   # causal carry
                pltpu.VMEM((MAX_PAD + TL, CP), mm_dtype),       # staging buffer
                pltpu.VMEM((TL, CP), jnp.float32),              # input lane pad
                pltpu.SemaphoreType.DMA((4,)),                  # weight-load sems
            ],
        ),
        compiler_params=pltpu.CompilerParams(
            dimension_semantics=("parallel", "arbitrary"),
            vmem_limit_bytes=vmem_limit,
        ),
    )(x, conv_w, conv_b, ds_w, ds_b)

    # bf16 lane-padded writeback; slice back to the logical view.
    return out_p[:, :L, :c_out_last]


# --------------------------------------------------------------------------
# Parameter init mirroring the PyTorch module (weight_norm is identity at init)
# --------------------------------------------------------------------------
def weight_norm(v):
    """nn.utils.weight_norm(dim=0): w = g * v / ||v|| with g initialized to ||v||."""
    norm = jnp.sqrt(jnp.sum(v * v, axis=tuple(range(1, v.ndim)), keepdims=True))
    return norm * v / norm                                       # == v at init


def init_tcn_params(key, num_inputs, num_channels, kernel_size):
    params = []
    in_c = num_inputs
    for i, out_c in enumerate(num_channels):
        d = 2 ** i
        key, k1, k2, kd, kb1, kb2, kbd = jax.random.split(key, 7)
        w1 = weight_norm(0.01 * jax.random.normal(k1, (out_c, in_c, kernel_size),
                                                  jnp.float32))
        w2 = weight_norm(0.01 * jax.random.normal(k2, (out_c, out_c, kernel_size),
                                                  jnp.float32))
        b1 = jax.random.uniform(kb1, (out_c,), jnp.float32,
                                -1 / math.sqrt(in_c * kernel_size),
                                1 / math.sqrt(in_c * kernel_size))
        b2 = jax.random.uniform(kb2, (out_c,), jnp.float32,
                                -1 / math.sqrt(out_c * kernel_size),
                                1 / math.sqrt(out_c * kernel_size))
        level = {"w1": w1, "b1": b1, "w2": w2, "b2": b2,
                 "dilation": d, "wd": None, "bd": None}
        if in_c != out_c:
            level["wd"] = 0.01 * jax.random.normal(kd, (out_c, in_c), jnp.float32)
            level["bd"] = jax.random.uniform(kbd, (out_c,), jnp.float32,
                                             -1 / math.sqrt(in_c),
                                             1 / math.sqrt(in_c))
        params.append(level)
        in_c = out_c
    return params


# --------------------------------------------------------------------------
# Pure-JAX f32 reference (mirrors TemporalConvNet.forward exactly)
# --------------------------------------------------------------------------
def ref_temporal_conv_net(x_blc, params, *, kernel_size):
    k = kernel_size
    h = jnp.transpose(x_blc, (0, 2, 1))                          # [B, C, L]
    for p in params:
        d = p["dilation"]
        pad = d * (k - 1)

        def conv(inp, w, b, pad=pad, d=d):
            y = jax.lax.conv_general_dilated(
                inp, w, window_strides=(1,), padding=[(pad, pad)],
                rhs_dilation=(d,), dimension_numbers=("NCH", "OIH", "NCH"))
            y = y[:, :, :y.shape[2] - pad]                       # Chomp1d
            return y + b[None, :, None]

        h1 = jnp.maximum(conv(h, p["w1"], p["b1"]), 0.0)
        h2 = jnp.maximum(conv(h1, p["w2"], p["b2"]), 0.0)
        if p["wd"] is not None:
            res = jnp.einsum("bcl,oc->bol", h, p["wd"]) + p["bd"][None, :, None]
        else:
            res = h
        h = jnp.maximum(h2 + res, 0.0)
    return jnp.transpose(h, (0, 2, 1))                           # [B, L, C_out]


if __name__ == "__main__":
    # Small deterministic setup consistent with TemporalConvNet:
    #   num_inputs=4, num_channels=[8, 8], kernel_size=3
    #   -> level 0: dilation 1, 1x1 downsample (4 != 8)
    #      level 1: dilation 2, identity residual (8 == 8)
    B, L = 2, 16
    num_inputs = 4
    num_channels = [8, 8]
    kernel_size = 3

    key = jax.random.PRNGKey(0)
    key, kx = jax.random.split(key)
    x = jax.random.normal(kx, (B, L, num_inputs), dtype=jnp.float32)
    params = init_tcn_params(key, num_inputs, num_channels, kernel_size)

    # tile_l=8 -> two L-tiles per batch element: exercises the causal carry.
    out = temporal_conv_net(x, params, kernel_size=kernel_size, tile_l=8)
    out = jax.block_until_ready(out)

    ref = ref_temporal_conv_net(x, params, kernel_size=kernel_size)
    assert out.shape == (B, L, num_channels[-1])
    # bf16 MXU inputs / bf16 output (f32 accumulation) vs f32 reference.
    out_f32 = out.astype(jnp.float32)
    max_err = float(jnp.max(jnp.abs(out_f32 - ref)))
    assert jnp.allclose(out_f32, ref, rtol=5e-2, atol=5e-3), f"max abs err {max_err}"

    print("KERNEL_OK")
</pallas_src>

<mosaic_0001>
module attributes {stable_mosaic.version = 11 : i64} {
  func.func @tcn_kernel(%arg0: i32, %arg1: i32, %arg2: memref<1x8x4xf32, #tpu.memory_space<vmem>>, %arg3: memref<4x384x128xbf16, #tpu.memory_space<any>>, %arg4: memref<4x1x128xf32, #tpu.memory_space<any>>, %arg5: memref<1x128x128xbf16, #tpu.memory_space<any>>, %arg6: memref<1x1x128xf32, #tpu.memory_space<any>>, %arg7: memref<1x8x128xbf16, #tpu.memory_space<vmem>>, %arg8: memref<4x384x128xbf16, #tpu.memory_space<vmem>>, %arg9: memref<4x1x128xf32, #tpu.memory_space<vmem>>, %arg10: memref<1x128x128xbf16, #tpu.memory_space<vmem>>, %arg11: memref<1x1x128xf32, #tpu.memory_space<vmem>>, %arg12: memref<4x8x128xbf16, #tpu.memory_space<vmem>>, %arg13: memref<16x128xbf16, #tpu.memory_space<vmem>>, %arg14: memref<8x128xf32, #tpu.memory_space<vmem>>, %arg15: memref<4x!tpu.dma_semaphore, #tpu.memory_space<semaphore_mem>>) attributes {dimension_semantics = [#tpu.dimension_semantics<parallel>, #tpu.dimension_semantics<arbitrary>], iteration_bounds = array<i64: 2, 2>, scalar_prefetch = 0 : i64, scratch_operands = 8 : i64, tpu.core_type = #tpu.core_type<tc>, window_params = [{transform_indices = @transform_0, window_bounds = array<i64: 1, 8, 4>}, {}, {}, {}, {}, {transform_indices = @transform_5, window_bounds = array<i64: 1, 8, 128>}]} {
    %c0_i32 = arith.constant 0 : i32
    %0 = arith.cmpi eq, %arg1, %c0_i32 : i32
    %1 = arith.extui %0 : i1 to i32
    %c0_i32_0 = arith.constant 0 : i32
    %2 = arith.cmpi ne, %1, %c0_i32_0 : i32
    scf.if %2 {
      %c0_i32_115 = arith.constant 0 : i32
      %112 = tpu.memref_slice %arg15[%c0_i32_115] : memref<4x!tpu.dma_semaphore, #tpu.memory_space<semaphore_mem>> -> memref<1x!tpu.dma_semaphore, #tpu.memory_space<semaphore_mem>>
      %113 = tpu.memref_squeeze %112 : memref<1x!tpu.dma_semaphore, #tpu.memory_space<semaphore_mem>> -> memref<!tpu.dma_semaphore, #tpu.memory_space<semaphore_mem>>
      tpu.enqueue_dma source(%arg3 : memref<4x384x128xbf16, #tpu.memory_space<any>>) target(%arg8 : memref<4x384x128xbf16, #tpu.memory_space<vmem>>) target_semaphore(%113 : memref<!tpu.dma_semaphore, #tpu.memory_space<semaphore_mem>>)
      %c1_i32 = arith.constant 1 : i32
      %114 = tpu.memref_slice %arg15[%c1_i32] : memref<4x!tpu.dma_semaphore, #tpu.memory_space<semaphore_mem>> -> memref<1x!tpu.dma_semaphore, #tpu.memory_space<semaphore_mem>>
      %115 = tpu.memref_squeeze %114 : memref<1x!tpu.dma_semaphore, #tpu.memory_space<semaphore_mem>> -> memref<!tpu.dma_semaphore, #tpu.memory_space<semaphore_mem>>
      tpu.enqueue_dma source(%arg4 : memref<4x1x128xf32, #tpu.memory_space<any>>) target(%arg9 : memref<4x1x128xf32, #tpu.memory_space<vmem>>) target_semaphore(%115 : memref<!tpu.dma_semaphore, #tpu.memory_space<semaphore_mem>>)
      %c2_i32 = arith.constant 2 : i32
      %116 = tpu.memref_slice %arg15[%c2_i32] : memref<4x!tpu.dma_semaphore, #tpu.memory_space<semaphore_mem>> -> memref<1x!tpu.dma_semaphore, #tpu.memory_space<semaphore_mem>>
      %117 = tpu.memref_squeeze %116 : memref<1x!tpu.dma_semaphore, #tpu.memory_space<semaphore_mem>> -> memref<!tpu.dma_semaphore, #tpu.memory_space<semaphore_mem>>
      tpu.enqueue_dma source(%arg5 : memref<1x128x128xbf16, #tpu.memory_space<any>>) target(%arg10 : memref<1x128x128xbf16, #tpu.memory_space<vmem>>) target_semaphore(%117 : memref<!tpu.dma_semaphore, #tpu.memory_space<semaphore_mem>>)
      %c3_i32 = arith.constant 3 : i32
      %118 = tpu.memref_slice %arg15[%c3_i32] : memref<4x!tpu.dma_semaphore, #tpu.memory_space<semaphore_mem>> -> memref<1x!tpu.dma_semaphore, #tpu.memory_space<semaphore_mem>>
      %119 = tpu.memref_squeeze %118 : memref<1x!tpu.dma_semaphore, #tpu.memory_space<semaphore_mem>> -> memref<!tpu.dma_semaphore, #tpu.memory_space<semaphore_mem>>
      tpu.enqueue_dma source(%arg6 : memref<1x1x128xf32, #tpu.memory_space<any>>) target(%arg11 : memref<1x1x128xf32, #tpu.memory_space<vmem>>) target_semaphore(%119 : memref<!tpu.dma_semaphore, #tpu.memory_space<semaphore_mem>>)
      %c0_i32_116 = arith.constant 0 : i32
      %120 = tpu.memref_slice %arg15[%c0_i32_116] : memref<4x!tpu.dma_semaphore, #tpu.memory_space<semaphore_mem>> -> memref<1x!tpu.dma_semaphore, #tpu.memory_space<semaphore_mem>>
      %121 = tpu.memref_squeeze %120 : memref<1x!tpu.dma_semaphore, #tpu.memory_space<semaphore_mem>> -> memref<!tpu.dma_semaphore, #tpu.memory_space<semaphore_mem>>
      tpu.wait_dma2 semaphore(%121 : memref<!tpu.dma_semaphore, #tpu.memory_space<semaphore_mem>>) src(%arg3 : memref<4x384x128xbf16, #tpu.memory_space<any>>) dst(%arg8 : memref<4x384x128xbf16, #tpu.memory_space<vmem>>)
      %c1_i32_117 = arith.constant 1 : i32
      %122 = tpu.memref_slice %arg15[%c1_i32_117] : memref<4x!tpu.dma_semaphore, #tpu.memory_space<semaphore_mem>> -> memref<1x!tpu.dma_semaphore, #tpu.memory_space<semaphore_mem>>
      %123 = tpu.memref_squeeze %122 : memref<1x!tpu.dma_semaphore, #tpu.memory_space<semaphore_mem>> -> memref<!tpu.dma_semaphore, #tpu.memory_space<semaphore_mem>>
      tpu.wait_dma2 semaphore(%123 : memref<!tpu.dma_semaphore, #tpu.memory_space<semaphore_mem>>) src(%arg4 : memref<4x1x128xf32, #tpu.memory_space<any>>) dst(%arg9 : memref<4x1x128xf32, #tpu.memory_space<vmem>>)
      %c2_i32_118 = arith.constant 2 : i32
      %124 = tpu.memref_slice %arg15[%c2_i32_118] : memref<4x!tpu.dma_semaphore, #tpu.memory_space<semaphore_mem>> -> memref<1x!tpu.dma_semaphore, #tpu.memory_space<semaphore_mem>>
      %125 = tpu.memref_squeeze %124 : memref<1x!tpu.dma_semaphore, #tpu.memory_space<semaphore_mem>> -> memref<!tpu.dma_semaphore, #tpu.memory_space<semaphore_mem>>
      tpu.wait_dma2 semaphore(%125 : memref<!tpu.dma_semaphore, #tpu.memory_space<semaphore_mem>>) src(%arg5 : memref<1x128x128xbf16, #tpu.memory_space<any>>) dst(%arg10 : memref<1x128x128xbf16, #tpu.memory_space<vmem>>)
      %c3_i32_119 = arith.constant 3 : i32
      %126 = tpu.memref_slice %arg15[%c3_i32_119] : memref<4x!tpu.dma_semaphore, #tpu.memory_space<semaphore_mem>> -> memref<1x!tpu.dma_semaphore, #tpu.memory_space<semaphore_mem>>
      %127 = tpu.memref_squeeze %126 : memref<1x!tpu.dma_semaphore, #tpu.memory_space<semaphore_mem>> -> memref<!tpu.dma_semaphore, #tpu.memory_space<semaphore_mem>>
      tpu.wait_dma2 semaphore(%127 : memref<!tpu.dma_semaphore, #tpu.memory_space<semaphore_mem>>) src(%arg6 : memref<1x1x128xf32, #tpu.memory_space<any>>) dst(%arg11 : memref<1x1x128xf32, #tpu.memory_space<vmem>>)
      %cst_120 = arith.constant 0.000000e+00 : bf16
      %128 = vector.broadcast %cst_120 : bf16 to vector<4x8x128xbf16>
      %c0_121 = arith.constant 0 : index
      %c0_122 = arith.constant 0 : index
      %c0_123 = arith.constant 0 : index
      %129 = vector.load %arg12[%c0_121, %c0_122, %c0_123] : memref<4x8x128xbf16, #tpu.memory_space<vmem>>, vector<4x8x128xbf16>
      tpu.vector_store %arg12[%c0_121, %c0_122, %c0_123], %128 {strides = array<i32>} : memref<4x8x128xbf16, #tpu.memory_space<vmem>>, vector<4x8x128xbf16>,
      %cst_124 = arith.constant 0.000000e+00 : f32
      %130 = vector.broadcast %cst_124 : f32 to vector<8x128xf32>
      %c0_125 = arith.constant 0 : index
      %c0_126 = arith.constant 0 : index
      %131 = vector.load %arg14[%c0_125, %c0_126] : memref<8x128xf32, #tpu.memory_space<vmem>>, vector<8x128xf32>
      tpu.vector_store %arg14[%c0_125, %c0_126], %130 {strides = array<i32>} : memref<8x128xf32, #tpu.memory_space<vmem>>, vector<8x128xf32>,
    } else {
    }
    %c0 = arith.constant 0 : index
    %c0_1 = arith.constant 0 : index
    %c0_2 = arith.constant 0 : index
    %3 = vector.load %arg2[%c0, %c0_1, %c0_2] : memref<1x8x4xf32, #tpu.memory_space<vmem>>, vector<1x8x4xf32>
    %4 = vector.shape_cast %3 : vector<1x8x4xf32> to vector<8x4xf32>
    %c0_3 = arith.constant 0 : index
    %c0_4 = arith.constant 0 : index
    %5 = vector.load %arg14[%c0_3, %c0_4] : memref<8x128xf32, #tpu.memory_space<vmem>>, vector<8x4xf32>
    tpu.vector_store %arg14[%c0_3, %c0_4], %4 {strides = array<i32>} : memref<8x128xf32, #tpu.memory_space<vmem>>, vector<8x4xf32>,
    %c0_5 = arith.constant 0 : index
    %c0_6 = arith.constant 0 : index
    %6 = vector.load %arg14[%c0_5, %c0_6] : memref<8x128xf32, #tpu.memory_space<vmem>>, vector<8x128xf32>
    %7 = arith.truncf %6 : vector<8x128xf32> to vector<8x128xbf16>
    %c0_7 = arith.constant 0 : index
    %c0_8 = arith.constant 0 : index
    %c0_9 = arith.constant 0 : index
    %8 = vector.load %arg12[%c0_7, %c0_8, %c0_9] : memref<4x8x128xbf16, #tpu.memory_space<vmem>>, vector<1x8x128xbf16>
    %9 = vector.shape_cast %8 : vector<1x8x128xbf16> to vector<8x128xbf16>
    %c0_10 = arith.constant 0 : index
    %c0_11 = arith.constant 0 : index
    %10 = vector.load %arg13[%c0_10, %c0_11] : memref<16x128xbf16, #tpu.memory_space<vmem>>, vector<8x128xbf16>
    tpu.vector_store %arg13[%c0_10, %c0_11], %9 {strides = array<i32>} : memref<16x128xbf16, #tpu.memory_space<vmem>>, vector<8x128xbf16>,
    %c8 = arith.constant 8 : index
    %c0_12 = arith.constant 0 : index
    %11 = vector.load %arg13[%c8, %c0_12] : memref<16x128xbf16, #tpu.memory_space<vmem>>, vector<8x128xbf16>
    tpu.vector_store %arg13[%c8, %c0_12], %7 {strides = array<i32>} : memref<16x128xbf16, #tpu.memory_space<vmem>>, vector<8x128xbf16>,
    %c8_13 = arith.constant 8 : index
    %c0_14 = arith.constant 0 : index
    %12 = vector.load %arg13[%c8_13, %c0_14] : memref<16x128xbf16, #tpu.memory_space<vmem>>, vector<8x128xbf16>
    %c0_15 = arith.constant 0 : index
    %c0_16 = arith.constant 0 : index
    %c0_17 = arith.constant 0 : index
    %13 = vector.load %arg12[%c0_15, %c0_16, %c0_17] : memref<4x8x128xbf16, #tpu.memory_space<vmem>>, vector<1x8x128xbf16>
    %14 = vector.shape_cast %13 : vector<1x8x128xbf16> to vector<8x128xbf16>
    %15 = vector.shape_cast %12 : vector<8x128xbf16> to vector<1x8x128xbf16>
    tpu.vector_store %arg12[%c0_15, %c0_16, %c0_17], %15 {strides = array<i32>} : memref<4x8x128xbf16, #tpu.memory_space<vmem>>, vector<1x8x128xbf16>,
    %c6 = arith.constant 6 : index
    %c0_18 = arith.constant 0 : index
    %16 = vector.load %arg13[%c6, %c0_18] : memref<16x128xbf16, #tpu.memory_space<vmem>>, vector<8x128xbf16>
    %c7 = arith.constant 7 : index
    %c0_19 = arith.constant 0 : index
    %17 = vector.load %arg13[%c7, %c0_19] : memref<16x128xbf16, #tpu.memory_space<vmem>>, vector<8x128xbf16>
    %c8_20 = arith.constant 8 : index
    %c0_21 = arith.constant 0 : index
    %18 = vector.load %arg13[%c8_20, %c0_21] : memref<16x128xbf16, #tpu.memory_space<vmem>>, vector<8x128xbf16>
    %19 = tpu.concatenate %16, %17, %18 in 1 : vector<8x128xbf16>, vector<8x128xbf16>, vector<8x128xbf16> -> vector<8x384xbf16>
    %c0_22 = arith.constant 0 : index
    %c0_23 = arith.constant 0 : index
    %c0_24 = arith.constant 0 : index
    %20 = vector.load %arg8[%c0_22, %c0_23, %c0_24] : memref<4x384x128xbf16, #tpu.memory_space<vmem>>, vector<1x384x128xbf16>
    %21 = vector.shape_cast %20 : vector<1x384x128xbf16> to vector<384x128xbf16>
    %cst = arith.constant dense<0.000000e+00> : vector<8x128xf32>
    %22 = tpu.matmul %19, %21, %cst {dimension_numbers = #tpu.dot_dimension_numbers<[1], [0], [0], [1], [0, 0, 1, 1], [], []>} : vector<8x384xbf16>, vector<384x128xbf16>, vector<8x128xf32> -> vector<8x128xf32>
    %c0_25 = arith.constant 0 : index
    %c0_26 = arith.constant 0 : index
    %c0_27 = arith.constant 0 : index
    %23 = vector.load %arg9[%c0_25, %c0_26, %c0_27] : memref<4x1x128xf32, #tpu.memory_space<vmem>>, vector<1x1x128xf32>
    %24 = vector.shape_cast %23 : vector<1x1x128xf32> to vector<1x128xf32>
    %25 = vector.broadcast %24 : vector<1x128xf32> to vector<8x128xf32>
    %26 = arith.addf %22, %25 : vector<8x128xf32>
    %cst_28 = arith.constant 0.000000e+00 : f32
    %27 = vector.broadcast %cst_28 : f32 to vector<8x128xf32>
    %28 = arith.maximumf %26, %27 : vector<8x128xf32>
    %29 = arith.truncf %28 : vector<8x128xf32> to vector<8x128xbf16>
    %c1 = arith.constant 1 : index
    %c0_29 = arith.constant 0 : index
    %c0_30 = arith.constant 0 : index
    %30 = vector.load %arg12[%c1, %c0_29, %c0_30] : memref<4x8x128xbf16, #tpu.memory_space<vmem>>, vector<1x8x128xbf16>
    %31 = vector.shape_cast %30 : vector<1x8x128xbf16> to vector<8x128xbf16>
    %c0_31 = arith.constant 0 : index
    %c0_32 = arith.constant 0 : index
    %32 = vector.load %arg13[%c0_31, %c0_32] : memref<16x128xbf16, #tpu.memory_space<vmem>>, vector<8x128xbf16>
    tpu.vector_store %arg13[%c0_31, %c0_32], %31 {strides = array<i32>} : memref<16x128xbf16, #tpu.memory_space<vmem>>, vector<8x128xbf16>,
    %c8_33 = arith.constant 8 : index
    %c0_34 = arith.constant 0 : index
    %33 = vector.load %arg13[%c8_33, %c0_34] : memref<16x128xbf16, #tpu.memory_space<vmem>>, vector<8x128xbf16>
    tpu.vector_store %arg13[%c8_33, %c0_34], %29 {strides = array<i32>} : memref<16x128xbf16, #tpu.memory_space<vmem>>, vector<8x128xbf16>,
    %c8_35 = arith.constant 8 : index
    %c0_36 = arith.constant 0 : index
    %34 = vector.load %arg13[%c8_35, %c0_36] : memref<16x128xbf16, #tpu.memory_space<vmem>>, vector<8x128xbf16>
    %c1_37 = arith.constant 1 : index
    %c0_38 = arith.constant 0 : index
    %c0_39 = arith.constant 0 : index
    %35 = vector.load %arg12[%c1_37, %c0_38, %c0_39] : memref<4x8x128xbf16, #tpu.memory_space<vmem>>, vector<1x8x128xbf16>
    %36 = vector.shape_cast %35 : vector<1x8x128xbf16> to vector<8x128xbf16>
    %37 = vector.shape_cast %34 : vector<8x128xbf16> to vector<1x8x128xbf16>
    tpu.vector_store %arg12[%c1_37, %c0_38, %c0_39], %37 {strides = array<i32>} : memref<4x8x128xbf16, #tpu.memory_space<vmem>>, vector<1x8x128xbf16>,
    %c6_40 = arith.constant 6 : index
    %c0_41 = arith.constant 0 : index
    %38 = vector.load %arg13[%c6_40, %c0_41] : memref<16x128xbf16, #tpu.memory_space<vmem>>, vector<8x128xbf16>
    %c7_42 = arith.constant 7 : index
    %c0_43 = arith.constant 0 : index
    %39 = vector.load %arg13[%c7_42, %c0_43] : memref<16x128xbf16, #tpu.memory_space<vmem>>, vector<8x128xbf16>
    %c8_44 = arith.constant 8 : index
    %c0_45 = arith.constant 0 : index
    %40 = vector.load %arg13[%c8_44, %c0_45] : memref<16x128xbf16, #tpu.memory_space<vmem>>, vector<8x128xbf16>
    %41 = tpu.concatenate %38, %39, %40 in 1 : vector<8x128xbf16>, vector<8x128xbf16>, vector<8x128xbf16> -> vector<8x384xbf16>
    %c1_46 = arith.constant 1 : index
    %c0_47 = arith.constant 0 : index
    %c0_48 = arith.constant 0 : index
    %42 = vector.load %arg8[%c1_46, %c0_47, %c0_48] : memref<4x384x128xbf16, #tpu.memory_space<vmem>>, vector<1x384x128xbf16>
    %43 = vector.shape_cast %42 : vector<1x384x128xbf16> to vector<384x128xbf16>
    %cst_49 = arith.constant dense<0.000000e+00> : vector<8x128xf32>
    %44 = tpu.matmul %41, %43, %cst_49 {dimension_numbers = #tpu.dot_dimension_numbers<[1], [0], [0], [1], [0, 0, 1, 1], [], []>} : vector<8x384xbf16>, vector<384x128xbf16>, vector<8x128xf32> -> vector<8x128xf32>
    %c1_50 = arith.constant 1 : index
    %c0_51 = arith.constant 0 : index
    %c0_52 = arith.constant 0 : index
    %45 = vector.load %arg9[%c1_50, %c0_51, %c0_52] : memref<4x1x128xf32, #tpu.memory_space<vmem>>, vector<1x1x128xf32>
    %46 = vector.shape_cast %45 : vector<1x1x128xf32> to vector<1x128xf32>
    %47 = vector.broadcast %46 : vector<1x128xf32> to vector<8x128xf32>
    %48 = arith.addf %44, %47 : vector<8x128xf32>
    %cst_53 = arith.constant 0.000000e+00 : f32
    %49 = vector.broadcast %cst_53 : f32 to vector<8x128xf32>
    %50 = arith.maximumf %48, %49 : vector<8x128xf32>
    %c0_54 = arith.constant 0 : index
    %c0_55 = arith.constant 0 : index
    %c0_56 = arith.constant 0 : index
    %51 = vector.load %arg10[%c0_54, %c0_55, %c0_56] : memref<1x128x128xbf16, #tpu.memory_space<vmem>>, vector<1x128x128xbf16>
    %52 = vector.shape_cast %51 : vector<1x128x128xbf16> to vector<128x128xbf16>
    %cst_57 = arith.constant dense<0.000000e+00> : vector<8x128xf32>
    %53 = tpu.matmul %7, %52, %cst_57 {dimension_numbers = #tpu.dot_dimension_numbers<[1], [0], [0], [1], [0, 0, 1, 1], [], []>} : vector<8x128xbf16>, vector<128x128xbf16>, vector<8x128xf32> -> vector<8x128xf32>
    %c0_58 = arith.constant 0 : index
    %c0_59 = arith.constant 0 : index
    %c0_60 = arith.constant 0 : index
    %54 = vector.load %arg11[%c0_58, %c0_59, %c0_60] : memref<1x1x128xf32, #tpu.memory_space<vmem>>, vector<1x1x128xf32>
    %55 = vector.shape_cast %54 : vector<1x1x128xf32> to vector<1x128xf32>
    %56 = vector.broadcast %55 : vector<1x128xf32> to vector<8x128xf32>
    %57 = arith.addf %53, %56 : vector<8x128xf32>
    %58 = arith.addf %50, %57 : vector<8x128xf32>
    %cst_61 = arith.constant 0.000000e+00 : f32
    %59 = vector.broadcast %cst_61 : f32 to vector<8x128xf32>
    %60 = arith.maximumf %58, %59 : vector<8x128xf32>
    %61 = arith.truncf %60 : vector<8x128xf32> to vector<8x128xbf16>
    %c2 = arith.constant 2 : index
    %c0_62 = arith.constant 0 : index
    %c0_63 = arith.constant 0 : index
    %62 = vector.load %arg12[%c2, %c0_62, %c0_63] : memref<4x8x128xbf16, #tpu.memory_space<vmem>>, vector<1x8x128xbf16>
    %63 = vector.shape_cast %62 : vector<1x8x128xbf16> to vector<8x128xbf16>
    %c0_64 = arith.constant 0 : index
    %c0_65 = arith.constant 0 : index
    %64 = vector.load %arg13[%c0_64, %c0_65] : memref<16x128xbf16, #tpu.memory_space<vmem>>, vector<8x128xbf16>
    tpu.vector_store %arg13[%c0_64, %c0_65], %63 {strides = array<i32>} : memref<16x128xbf16, #tpu.memory_space<vmem>>, vector<8x128xbf16>,
    %c8_66 = arith.constant 8 : index
    %c0_67 = arith.constant 0 : index
    %65 = vector.load %arg13[%c8_66, %c0_67] : memref<16x128xbf16, #tpu.memory_space<vmem>>, vector<8x128xbf16>
    tpu.vector_store %arg13[%c8_66, %c0_67], %61 {strides = array<i32>} : memref<16x128xbf16, #tpu.memory_space<vmem>>, vector<8x128xbf16>,
    %c8_68 = arith.constant 8 : index
    %c0_69 = arith.constant 0 : index
    %66 = vector.load %arg13[%c8_68, %c0_69] : memref<16x128xbf16, #tpu.memory_space<vmem>>, vector<8x128xbf16>
    %c2_70 = arith.constant 2 : index
    %c0_71 = arith.constant 0 : index
    %c0_72 = arith.constant 0 : index
    %67 = vector.load %arg12[%c2_70, %c0_71, %c0_72] : memref<4x8x128xbf16, #tpu.memory_space<vmem>>, vector<1x8x128xbf16>
    %68 = vector.shape_cast %67 : vector<1x8x128xbf16> to vector<8x128xbf16>
    %69 = vector.shape_cast %66 : vector<8x128xbf16> to vector<1x8x128xbf16>
    tpu.vector_store %arg12[%c2_70, %c0_71, %c0_72], %69 {strides = array<i32>} : memref<4x8x128xbf16, #tpu.memory_space<vmem>>, vector<1x8x128xbf16>,
    %c4 = arith.constant 4 : index
    %c0_73 = arith.constant 0 : index
    %70 = vector.load %arg13[%c4, %c0_73] : memref<16x128xbf16, #tpu.memory_space<vmem>>, vector<8x128xbf16>
    %c6_74 = arith.constant 6 : index
    %c0_75 = arith.constant 0 : index
    %71 = vector.load %arg13[%c6_74, %c0_75] : memref<16x128xbf16, #tpu.memory_space<vmem>>, vector<8x128xbf16>
    %c8_76 = arith.constant 8 : index
    %c0_77 = arith.constant 0 : index
    %72 = vector.load %arg13[%c8_76, %c0_77] : memref<16x128xbf16, #tpu.memory_space<vmem>>, vector<8x128xbf16>
    %73 = tpu.concatenate %70, %71, %72 in 1 : vector<8x128xbf16>, vector<8x128xbf16>, vector<8x128xbf16> -> vector<8x384xbf16>
    %c2_78 = arith.constant 2 : index
    %c0_79 = arith.constant 0 : index
    %c0_80 = arith.constant 0 : index
    %74 = vector.load %arg8[%c2_78, %c0_79, %c0_80] : memref<4x384x128xbf16, #tpu.memory_space<vmem>>, vector<1x384x128xbf16>
    %75 = vector.shape_cast %74 : vector<1x384x128xbf16> to vector<384x128xbf16>
    %cst_81 = arith.constant dense<0.000000e+00> : vector<8x128xf32>
    %76 = tpu.matmul %73, %75, %cst_81 {dimension_numbers = #tpu.dot_dimension_numbers<[1], [0], [0], [1], [0, 0, 1, 1], [], []>} : vector<8x384xbf16>, vector<384x128xbf16>, vector<8x128xf32> -> vector<8x128xf32>
    %c2_82 = arith.constant 2 : index
    %c0_83 = arith.constant 0 : index
    %c0_84 = arith.constant 0 : index
    %77 = vector.load %arg9[%c2_82, %c0_83, %c0_84] : memref<4x1x128xf32, #tpu.memory_space<vmem>>, vector<1x1x128xf32>
    %78 = vector.shape_cast %77 : vector<1x1x128xf32> to vector<1x128xf32>
    %79 = vector.broadcast %78 : vector<1x128xf32> to vector<8x128xf32>
    %80 = arith.addf %76, %79 : vector<8x128xf32>
    %cst_85 = arith.constant 0.000000e+00 : f32
    %81 = vector.broadcast %cst_85 : f32 to vector<8x128xf32>
    %82 = arith.maximumf %80, %81 : vector<8x128xf32>
    %83 = arith.truncf %82 : vector<8x128xf32> to vector<8x128xbf16>
    %c3 = arith.constant 3 : index
    %c0_86 = arith.constant 0 : index
    %c0_87 = arith.constant 0 : index
    %84 = vector.load %arg12[%c3, %c0_86, %c0_87] : memref<4x8x128xbf16, #tpu.memory_space<vmem>>, vector<1x8x128xbf16>
    %85 = vector.shape_cast %84 : vector<1x8x128xbf16> to vector<8x128xbf16>
    %c0_88 = arith.constant 0 : index
    %c0_89 = arith.constant 0 : index
    %86 = vector.load %arg13[%c0_88, %c0_89] : memref<16x128xbf16, #tpu.memory_space<vmem>>, vector<8x128xbf16>
    tpu.vector_store %arg13[%c0_88, %c0_89], %85 {strides = array<i32>} : memref<16x128xbf16, #tpu.memory_space<vmem>>, vector<8x128xbf16>,
    %c8_90 = arith.constant 8 : index
    %c0_91 = arith.constant 0 : index
    %87 = vector.load %arg13[%c8_90, %c0_91] : memref<16x128xbf16, #tpu.memory_space<vmem>>, vector<8x128xbf16>
    tpu.vector_store %arg13[%c8_90, %c0_91], %83 {strides = array<i32>} : memref<16x128xbf16, #tpu.memory_space<vmem>>, vector<8x128xbf16>,
    %c8_92 = arith.constant 8 : index
    %c0_93 = arith.constant 0 : index
    %88 = vector.load %arg13[%c8_92, %c0_93] : memref<16x128xbf16, #tpu.memory_space<vmem>>, vector<8x128xbf16>
    %c3_94 = arith.constant 3 : index
    %c0_95 = arith.constant 0 : index
    %c0_96 = arith.constant 0 : index
    %89 = vector.load %arg12[%c3_94, %c0_95, %c0_96] : memref<4x8x128xbf16, #tpu.memory_space<vmem>>, vector<1x8x128xbf16>
    %90 = vector.shape_cast %89 : vector<1x8x128xbf16> to vector<8x128xbf16>
    %91 = vector.shape_cast %88 : vector<8x128xbf16> to vector<1x8x128xbf16>
    tpu.vector_store %arg12[%c3_94, %c0_95, %c0_96], %91 {strides = array<i32>} : memref<4x8x128xbf16, #tpu.memory_space<vmem>>, vector<1x8x128xbf16>,
    %c4_97 = arith.constant 4 : index
    %c0_98 = arith.constant 0 : index
    %92 = vector.load %arg13[%c4_97, %c0_98] : memref<16x128xbf16, #tpu.memory_space<vmem>>, vector<8x128xbf16>
    %c6_99 = arith.constant 6 : index
    %c0_100 = arith.constant 0 : index
    %93 = vector.load %arg13[%c6_99, %c0_100] : memref<16x128xbf16, #tpu.memory_space<vmem>>, vector<8x128xbf16>
    %c8_101 = arith.constant 8 : index
    %c0_102 = arith.constant 0 : index
    %94 = vector.load %arg13[%c8_101, %c0_102] : memref<16x128xbf16, #tpu.memory_space<vmem>>, vector<8x128xbf16>
    %95 = tpu.concatenate %92, %93, %94 in 1 : vector<8x128xbf16>, vector<8x128xbf16>, vector<8x128xbf16> -> vector<8x384xbf16>
    %c3_103 = arith.constant 3 : index
    %c0_104 = arith.constant 0 : index
    %c0_105 = arith.constant 0 : index
    %96 = vector.load %arg8[%c3_103, %c0_104, %c0_105] : memref<4x384x128xbf16, #tpu.memory_space<vmem>>, vector<1x384x128xbf16>
    %97 = vector.shape_cast %96 : vector<1x384x128xbf16> to vector<384x128xbf16>
    %cst_106 = arith.constant dense<0.000000e+00> : vector<8x128xf32>
    %98 = tpu.matmul %95, %97, %cst_106 {dimension_numbers = #tpu.dot_dimension_numbers<[1], [0], [0], [1], [0, 0, 1, 1], [], []>} : vector<8x384xbf16>, vector<384x128xbf16>, vector<8x128xf32> -> vector<8x128xf32>
    %c3_107 = arith.constant 3 : index
    %c0_108 = arith.constant 0 : index
    %c0_109 = arith.constant 0 : index
    %99 = vector.load %arg9[%c3_107, %c0_108, %c0_109] : memref<4x1x128xf32, #tpu.memory_space<vmem>>, vector<1x1x128xf32>
    %100 = vector.shape_cast %99 : vector<1x1x128xf32> to vector<1x128xf32>
    %101 = vector.broadcast %100 : vector<1x128xf32> to vector<8x128xf32>
    %102 = arith.addf %98, %101 : vector<8x128xf32>
    %cst_110 = arith.constant 0.000000e+00 : f32
    %103 = vector.broadcast %cst_110 : f32 to vector<8x128xf32>
    %104 = arith.maximumf %102, %103 : vector<8x128xf32>
    %105 = arith.addf %104, %60 : vector<8x128xf32>
    %cst_111 = arith.constant 0.000000e+00 : f32
    %106 = vector.broadcast %cst_111 : f32 to vector<8x128xf32>
    %107 = arith.maximumf %105, %106 : vector<8x128xf32>
    %108 = arith.truncf %107 : vector<8x128xf32> to vector<8x128xbf16>
    %c0_112 = arith.constant 0 : index
    %c0_113 = arith.constant 0 : index
    %c0_114 = arith.constant 0 : index
    %109 = vector.load %arg7[%c0_112, %c0_113, %c0_114] : memref<1x8x128xbf16, #tpu.memory_space<vmem>>, vector<1x8x128xbf16>
    %110 = vector.shape_cast %109 : vector<1x8x128xbf16> to vector<8x128xbf16>
    %111 = vector.shape_cast %108 : vector<8x128xbf16> to vector<1x8x128xbf16>
    tpu.vector_store %arg7[%c0_112, %c0_113, %c0_114], %111 {strides = array<i32>} : memref<1x8x128xbf16, #tpu.memory_space<vmem>>, vector<1x8x128xbf16>,
    return
  }
  func.func @transform_0(%arg0: i32, %arg1: i32) -> (i32, i32, i32) {
    %c0_i32 = arith.constant 0 : i32
    %c0_i32_0 = arith.constant 0 : i32
    return %arg0, %arg1, %c0_i32 : i32, i32, i32
  }
  func.func @transform_5(%arg0: i32, %arg1: i32) -> (i32, i32, i32) {
    %c0_i32 = arith.constant 0 : i32
    %c0_i32_0 = arith.constant 0 : i32
    return %arg0, %arg1, %c0_i32 : i32, i32, i32
  }
}

</mosaic_0001>

<llo_original>
// kernel: tpu_custom_call.1
$region0: #{tpu_custom_call.1}
  #allocation0 [shape = 'u32[]', space=smem, size = 0x4, offset = 0x4, fixed_abs, tag = 'smem constant byte address 0x4 - core index']
  #allocation1 [shape = 'u32[144,128]{1,0:T(1,128)}', space=vmem, size = 0x12000, scoped, tag = 'internal scratch']
  #allocation2 [shape = 'bf16[4,384,128]{2,1,0:T(16,128)(2,1)}', space=vmem, size = 0x60000, scoped, tag = 'scratch operand']
  #allocation3 [shape = 'f32[4,1,128]{2,1,0:T(1,128)}', space=vmem, size = 0x800, scoped, tag = 'scratch operand']
  #allocation4 [shape = 'bf16[1,128,128]{2,1,0:T(16,128)(2,1)}', space=vmem, size = 0x8000, scoped, tag = 'scratch operand']
  #allocation5 [shape = 'f32[1,1,128]{2,1,0:T(1,128)}', space=vmem, size = 0x200, scoped, tag = 'scratch operand']
  #allocation6 [shape = 'bf16[4,8,128]{2,1,0:T(8,128)(2,1)}', space=vmem, size = 0x2000, scoped, tag = 'scratch operand']
  #allocation7 [shape = 'bf16[16,128]{1,0:T(16,128)(2,1)}', space=vmem, size = 0x1000, scoped, tag = 'scratch operand']
  #allocation8 [shape = 'f32[8,128]{1,0:T(8,128)}', space=vmem, size = 0x1000, scoped, tag = 'scratch operand']
  #allocation9 [shape = 's32[4]{0}', space=sflag, size = 0x10, scoped, tag = 'scratch operand']
  #allocation12 [shape = 's32[]', space=sflag, size = 0x4, offset = 0, fixed_abs, tag = 'sflag constant byte address 0x0 - dummy sync flag']
  #allocation13 [shape = 's32[]', space=sflag, size = 0x4, offset = 0, fixed_abs, tag = 'sflag constant byte address 0x0 - dummy sync flag']
  #allocation14 [shape = 'u32[]', space=smem, size = 0x4, offset = 0x44, fixed_abs, tag = 'smem constant byte address 0x44 - assertion arg 0']
  #allocation15 [shape = 'u32[]', space=smem, size = 0x4, offset = 0x48, fixed_abs, tag = 'smem constant byte address 0x48 - assertion arg 1']
  #allocation16 [shape = 's32[]', space=sflag, size = 0x4, offset = 0, fixed_abs, tag = 'sflag constant byte address 0x0 - dummy sync flag']
  #allocation17 [shape = 's32[]', space=sflag, size = 0x4, offset = 0, fixed_abs, tag = 'sflag constant byte address 0x0 - dummy sync flag']
  #allocation18 [shape = 's32[]', space=sflag, size = 0x4, offset = 0, fixed_abs, tag = 'sflag constant byte address 0x0 - dummy sync flag']
  #allocation19 [shape = 's32[]', space=sflag, size = 0x4, offset = 0, fixed_abs, tag = 'sflag constant byte address 0x0 - dummy sync flag']
  %s0 = inlined_call_operand.vmem [shape: f32[2,16,4], index: 0, kind: input, shape index: {}]
  %s1 = inlined_call_operand.hbm [shape: bf16[4,384,128], index: 1, kind: input, shape index: {}]
  %s2 = inlined_call_operand.vmem [shape: f32[4,1,128], index: 2, kind: input, shape index: {}]
  %s3 = inlined_call_operand.hbm [shape: bf16[1,128,128], index: 3, kind: input, shape index: {}]
  %s4 = inlined_call_operand.vmem [shape: f32[1,1,128], index: 4, kind: input, shape index: {}]
  %s5 = inlined_call_operand.hbm [shape: bf16[2,16,128], index: 5, kind: output, shape index: {}]
  %s6 = sld [smem:[#allocation0]]
  $region109: #{tpu_custom_call.1} parent=0
    _
  %s8 = ssub.s32 1, %s6
  %s9 = scalar_select 0, %s8, %s6
  $region1: #{tpu_custom_call.1} parent=0
    #allocation10 [shape = 'u8[4096]{0}', space=vmem, size = 0x1000, scoped, tag = 'output window, operand 0']
    #allocation11 [shape = 's32[2]{0}', space=sflag, size = 0x8, scoped, tag = 'scoped memory for tpu_custom_call.1']
    %10 = vsyncpa [#allocation11], 0
    %s11 = scalar_lea.sflag [#allocation11], 1
    %12 = vsyncpa %s11, 0
    loop: start=0, step=1, limit=6
    $region2: #{tpu_custom_call.1} parent=1 // loop_pre_header
      _
    $region3: #{tpu_custom_call.1} parent=1 // loop_header
      %s14 = sphi 0, %s18
      %p15 = scmp.ge.s32.totalorder %s14, 6
      %s21 = sphi 0, %s33
      %s22 = sphi 0, %s29
      %s23 = sphi 0, %s21
      %s24 = sphi 0, %s22
      %s25 = sphi 0, %s23
      %s26 = sphi 0, %s24
      %s38 = sphi 0, %s40
      %s41 = sphi 0, %s38
      %s42 = sphi 0, %s41
      %s58 = sphi 0, %s42
      %s66 = sphi 0, %s68
      %s69 = sphi 0, %s66
      %s70 = sphi 0, %s69
      %s86 = sphi 0, %s70
    $region4: #{tpu_custom_call.1} parent=1 // loop_header_branch
      %17 = sbr.rel (%p15) target = $region8
    $region5: #{tpu_custom_call.1} parent=1 // loop_body
      %s19 = ssub.s32 %s14, 1
      %s20 = ssub.s32 %s14, 2
      %s27 = sadd.s32 1, %s22
      %p28 = scmp.ge.s32.totalorder %s27, 2
      %s29 = scalar_select %p28, 0, %s27
      %s30 = sadd.s32 1, %s21
      %s31 = scalar_select %p28, %s30, %s21
      %p32 = scmp.ge.s32.totalorder %s31, 2
      %s33 = scalar_select %p32, 0, %s31
      %s34 = ssub.s32 %s21, %s33
      %s35 = ssub.s32 %s22, %s29
      %s36 = sor.u32 %s34, %s35
      %p37 = scmp.eq.s32.totalorder %s36, 0
      %s39 = sadd.s32 %s38, 1
      %s40 = scalar_select %p37, %s38, %s39
      %p43 = pneg %p37
      %p44 = scmp.eq.s32.totalorder %s14, 3
      %p45 = por %p43, %p44
      %p46 = scmp.ne.s32.totalorder %s38, %s41
      %p47 = scmp.eq.s32.totalorder %s14, 0
      %p48 = por %p46, %p47
      %p49 = scmp.ne.s32.totalorder %s38, %s41
      %p50 = scmp.eq.s32.totalorder %s19, 3
      %p51 = por %p49, %p50
      %p52 = scmp.ne.s32.totalorder %s41, %s42
      %p53 = scmp.eq.s32.totalorder %s19, 0
      %p54 = por %p52, %p53
      %p55 = scmp.ne.s32.totalorder %s41, %s42
      %p56 = scmp.eq.s32.totalorder %s20, 3
      %p57 = por %p55, %p56
      %p59 = scmp.ne.s32.totalorder %s42, %s58
      %p60 = scmp.eq.s32.totalorder %s20, 0
      %p61 = por %p59, %p60
      %s62 = ssub.s32 %s21, %s33
      %s63 = ssub.s32 %s22, %s29
      %s64 = sor.u32 %s62, %s63
      %p65 = scmp.eq.s32.totalorder %s64, 0
      %s67 = sadd.s32 %s66, 1
      %s68 = scalar_select %p65, %s66, %s67
      %p71 = pneg %p65
      %p72 = scmp.eq.s32.totalorder %s14, 3
      %p73 = por %p71, %p72
      %p74 = scmp.ne.s32.totalorder %s66, %s69
      %p75 = scmp.eq.s32.totalorder %s14, 0
      %p76 = por %p74, %p75
      %p77 = scmp.ne.s32.totalorder %s66, %s69
      %p78 = scmp.eq.s32.totalorder %s19, 3
      %p79 = por %p77, %p78
      %p80 = scmp.ne.s32.totalorder %s69, %s70
      %p81 = scmp.eq.s32.totalorder %s19, 0
      %p82 = por %p80, %p81
      %p83 = scmp.ne.s32.totalorder %s69, %s70
      %p84 = scmp.eq.s32.totalorder %s20, 3
      %p85 = por %p83, %p84
      %p87 = scmp.ne.s32.totalorder %s70, %s86
      %p88 = scmp.eq.s32.totalorder %s20, 0
      %p89 = por %p87, %p88
      %p90 = scmp.le.s32.totalorder 1, %s14
      %p91 = scmp.lt.s32.totalorder %s14, 5
      %p92 = pnand %p90, %p91
      %p93 = pneg %p92
      // Predicated region
      $region9: #{tpu_custom_call.1} parent=5 // pred_check
        _
      $region10: #{tpu_custom_call.1} parent=5 // pred_check_branch
        %95 = sbr.rel (%p92) target = $region12
      $region11: #{tpu_custom_call.1} parent=5 // pred_region
        %s96 = ssub.s32 %s14, 1
      $region12: #{tpu_custom_call.1} parent=5 // pred_fallthru
        _
      %p97 = scmp.lt.s32.totalorder %s14, 4
      // Predicated region
      $region13: #{tpu_custom_call.1} parent=5 // pred_check
        %p98 = pneg %p97
      $region14: #{tpu_custom_call.1} parent=5 // pred_check_branch
        %100 = sbr.rel (%p98) target = $region16
      $region15: #{tpu_custom_call.1} parent=5 // pred_region
        // Predicated region
        $region17: #{tpu_custom_call.1} parent=15 // pred_check
          %p101 = pneg %p48
        $region18: #{tpu_custom_call.1} parent=15 // pred_check_branch
          %103 = sbr.rel (%p101) target = $region20
        $region19: #{tpu_custom_call.1} parent=15 // pred_region
          %p104 = scmp.lt.s32.totalorder %s21, 1
          %s105 = scalar_select %p104, %s21, 1
          %p106 = scmp.lt.s32.totalorder %s22, 1
          %s107 = scalar_select %p106, %s22, 1
          %s108 = smul.addr %s105, 2
          %s109 = sadd.s32 %s107, %s108
          %s110 = smul.addr %s109, 8
          %s111 = scalar_lea.vmem %s0, %s110
        $region20: #{tpu_custom_call.1} parent=15 // pred_fallthru
          _
      $region16: #{tpu_custom_call.1} parent=5 // pred_fallthru
        _
      %p112 = scmp.le.s32.totalorder 1, %s14
      %p113 = scmp.lt.s32.totalorder %s14, 5
      %p114 = pnand %p112, %p113
      %p115 = pneg %p114
      // Predicated region
      $region21: #{tpu_custom_call.1} parent=5 // pred_check
        _
      $region22: #{tpu_custom_call.1} parent=5 // pred_check_branch
        %117 = sbr.rel (%p114) target = $region24
      $region23: #{tpu_custom_call.1} parent=5 // pred_region
        %s118 = ssub.s32 %s14, 1
        %p119 = scmp.lt.s32.totalorder %s23, 1
        %s120 = scalar_select %p119, %s23, 1
        %p121 = scmp.lt.s32.totalorder %s24, 1
        %s122 = scalar_select %p121, %s24, 1
        %s123 = smul.addr %s120, 2
        %s124 = sadd.s32 %s122, %s123
        %s125 = smul.addr %s124, 8
        %s126 = scalar_lea.vmem %s0, %s125
        %p127 = pneg %p54
        %p128 = pneg %p51
        %p129 = pneg %p82
        %p130 = pneg %p79
        %s131 = sand.u32 %s69, 1
        %s132 = scalar_lea.sflag [#allocation11], %s131
        %s133 = sand.u32 %s69, 1
        %s134 = smul.addr %s133, 4
        %s135 = scalar_lea.vmem [#allocation10], %s134
        %p136 = scmp.lt.s32.totalorder %s23, 1
        %s137 = scalar_select %p136, %s23, 1
        %p138 = scmp.lt.s32.totalorder %s24, 1
        %s139 = scalar_select %p138, %s24, 1
        %s140 = smul.addr %s137, 2
        %s141 = sadd.s32 %s139, %s140
        %s142 = smul.addr %s141, 8
        %s143 = scalar_lea.vmem %s0, %s142
        %p145 = scmp.eq.s32.totalorder %s24, 0
        // Predicated region
        $region25: #{tpu_custom_call.1} parent=23 // pred_check
          %p146 = pneg %p145
        $region26: #{tpu_custom_call.1} parent=23 // pred_check_branch
          %148 = sbr.rel (%p146) target = $region28
        $region27: #{tpu_custom_call.1} parent=23 // pred_region
          // Predicated region
          $region29: #{tpu_custom_call.1} parent=27 // pred_check
            _
          $region30: #{tpu_custom_call.1} parent=27 // pred_check_branch
            %150 = sbr.rel target = $region32
          $region31: #{tpu_custom_call.1} parent=27 // pred_region
            %151 = sst [smem:[#allocation14]] [#allocation13]
            %152 = sst [smem:[#allocation15]] [#allocation12]
          $region32: #{tpu_custom_call.1} parent=27 // pred_fallthru
            _
          %154 = shalt.err (0)
          %s156 = sshll.u32 [#allocation2], 4
          %s157 = int_to_ptr.vmem [resolvable:$true] %s156
          %159 = dma.hbm_to_vmem [thread:$0]  %s1, 12288, %s157, [#allocation9]
          %s160 = scalar_lea.sflag [#allocation9], 1
          %p162 = scmp.lt.u32.totalorder 4, 8
          %p163 = pneg %p162
          // Predicated region
          $region33: #{tpu_custom_call.1} parent=27 // pred_check
            _
          $region34: #{tpu_custom_call.1} parent=27 // pred_check_branch
            %165 = sbr.rel (%p162) target = $region36
          $region35: #{tpu_custom_call.1} parent=27 // pred_region
            %s180 = sand.u32 4, 7
            %p181 = scmp.eq.s32.totalorder %s180, 0
            %p182 = pneg %p181
            // Predicated region
            $region48: #{tpu_custom_call.1} parent=35 // pred_check
              _
            $region49: #{tpu_custom_call.1} parent=35 // pred_check_branch
              %184 = sbr.rel (%p181) target = $region51
            $region50: #{tpu_custom_call.1} parent=35 // pred_region
              %s185 = sand.u32 4, 7
              %s186 = ssub.s32 4, %s185
              %s187 = scalar_lea.vmem %s2, %s186
              %s188 = ssub.s32 4, %s185
              %s189 = scalar_lea.vmem [#allocation3], %s188
              %s190 = sshllo.u32 0, %s185
              loop: start=0, step=1, limit=1
              $region52: #{tpu_custom_call.1} parent=50 // loop_pre_header
                _
              $region53: #{tpu_custom_call.1} parent=50 // loop_header
                %s192 = sphi 0, %s196
                %p193 = scmp.ge.s32.totalorder %s192, 1
                %s197 = sphi %s187, %s187
                %s198 = sphi %s189, %s189
              $region54: #{tpu_custom_call.1} parent=50 // loop_header_branch
                %195 = sbr.rel (%p193) target = $region58
              $region55: #{tpu_custom_call.1} parent=50 // loop_body
                %v199 = vld [vmem:[%s197] sm:%s190]
                %200 = vst [vmem:[%s198] sm:%s190] %v199
              $region56: #{tpu_custom_call.1} parent=50 // loop_footer
                %s196 = sadd.s32 1, %s192
              $region57: #{tpu_custom_call.1} parent=50 // loop_footer_branch
                %191 = sbr.rel target = $region53
              $region58: #{tpu_custom_call.1} parent=50 // loop_exit
                _
            $region51: #{tpu_custom_call.1} parent=35 // pred_fallthru
              _
          $region36: #{tpu_custom_call.1} parent=27 // pred_fallthru
            _
          // Predicated region
          $region37: #{tpu_custom_call.1} parent=27 // pred_check
            %p166 = pneg %p162
          $region38: #{tpu_custom_call.1} parent=27 // pred_check_branch
            %168 = sbr.rel (%p166) target = $region40
          $region39: #{tpu_custom_call.1} parent=27 // pred_region
            %s169 = sshllo.u32 0, 4
            loop: start=0, step=1, limit=1
            $region41: #{tpu_custom_call.1} parent=39 // loop_pre_header
              _
            $region42: #{tpu_custom_call.1} parent=39 // loop_header
              %s171 = sphi 0, %s175
              %p172 = scmp.ge.s32.totalorder %s171, 1
              %s176 = sphi %s2, %s2
              %s177 = sphi [#allocation3], [#allocation3]
            $region43: #{tpu_custom_call.1} parent=39 // loop_header_branch
              %174 = sbr.rel (%p172) target = $region47
            $region44: #{tpu_custom_call.1} parent=39 // loop_body
              %v178 = vld [vmem:[%s176] sm:%s169]
              %179 = vst [vmem:[%s177] sm:%s169] %v178
            $region45: #{tpu_custom_call.1} parent=39 // loop_footer
              %s175 = sadd.s32 1, %s171
            $region46: #{tpu_custom_call.1} parent=39 // loop_footer_branch
              %170 = sbr.rel target = $region42
            $region47: #{tpu_custom_call.1} parent=39 // loop_exit
              _
          $region40: #{tpu_custom_call.1} parent=27 // pred_fallthru
            _
          // Predicated region
          $region59: #{tpu_custom_call.1} parent=27 // pred_check
            _
          $region60: #{tpu_custom_call.1} parent=27 // pred_check_branch
            %203 = sbr.rel (0) target = $region62
          $region61: #{tpu_custom_call.1} parent=27 // pred_region
            %204 = vsyncadd %s160, 64
          $region62: #{tpu_custom_call.1} parent=27 // pred_fallthru
            _
          %s205 = scalar_lea.sflag [#allocation9], 2
          // Predicated region
          $region63: #{tpu_custom_call.1} parent=27 // pred_check
            _
          $region64: #{tpu_custom_call.1} parent=27 // pred_check_branch
            %207 = sbr.rel target = $region66
          $region65: #{tpu_custom_call.1} parent=27 // pred_region
            %208 = sst [smem:[#allocation14]] [#allocation18]
            %209 = sst [smem:[#allocation15]] [#allocation17]
          $region66: #{tpu_custom_call.1} parent=27 // pred_fallthru
            _
          %211 = shalt.err (0)
          %s213 = sshll.u32 [#allocation4], 4
          %s214 = int_to_ptr.vmem [resolvable:$true] %s213
          %216 = dma.hbm_to_vmem [thread:$0]  %s3, 1024, %s214, %s205
          %s217 = scalar_lea.sflag [#allocation9], 3
          %p219 = scmp.lt.u32.totalorder 1, 8
          %p220 = pneg %p219
          // Predicated region
          $region67: #{tpu_custom_call.1} parent=27 // pred_check
            _
          $region68: #{tpu_custom_call.1} parent=27 // pred_check_branch
            %222 = sbr.rel (%p219) target = $region70
          $region69: #{tpu_custom_call.1} parent=27 // pred_region
            %s237 = sand.u32 1, 7
            %p238 = scmp.eq.s32.totalorder %s237, 0
            %p239 = pneg %p238
            // Predicated region
            $region82: #{tpu_custom_call.1} parent=69 // pred_check
              _
            $region83: #{tpu_custom_call.1} parent=69 // pred_check_branch
              %241 = sbr.rel (%p238) target = $region85
            $region84: #{tpu_custom_call.1} parent=69 // pred_region
              %s242 = sand.u32 1, 7
              %s243 = ssub.s32 1, %s242
              %s244 = scalar_lea.vmem %s4, %s243
              %s245 = ssub.s32 1, %s242
              %s246 = scalar_lea.vmem [#allocation5], %s245
              %s247 = sshllo.u32 0, %s242
              loop: start=0, step=1, limit=1
              $region86: #{tpu_custom_call.1} parent=84 // loop_pre_header
                _
              $region87: #{tpu_custom_call.1} parent=84 // loop_header
                %s249 = sphi 0, %s253
                %p250 = scmp.ge.s32.totalorder %s249, 1
                %s254 = sphi %s244, %s244
                %s255 = sphi %s246, %s246
              $region88: #{tpu_custom_call.1} parent=84 // loop_header_branch
                %252 = sbr.rel (%p250) target = $region92
              $region89: #{tpu_custom_call.1} parent=84 // loop_body
                %v256 = vld [vmem:[%s254] sm:%s247]
                %257 = vst [vmem:[%s255] sm:%s247] %v256
              $region90: #{tpu_custom_call.1} parent=84 // loop_footer
                %s253 = sadd.s32 1, %s249
              $region91: #{tpu_custom_call.1} parent=84 // loop_footer_branch
                %248 = sbr.rel target = $region87
              $region92: #{tpu_custom_call.1} parent=84 // loop_exit
                _
            $region85: #{tpu_custom_call.1} parent=69 // pred_fallthru
              _
          $region70: #{tpu_custom_call.1} parent=27 // pred_fallthru
            _
          // Predicated region
          $region71: #{tpu_custom_call.1} parent=27 // pred_check
            %p223 = pneg %p219
          $region72: #{tpu_custom_call.1} parent=27 // pred_check_branch
            %225 = sbr.rel (%p223) target = $region74
          $region73: #{tpu_custom_call.1} parent=27 // pred_region
            %s226 = sshllo.u32 0, 1
            loop: start=0, step=1, limit=1
            $region75: #{tpu_custom_call.1} parent=73 // loop_pre_header
              _
            $region76: #{tpu_custom_call.1} parent=73 // loop_header
              %s228 = sphi 0, %s232
              %p229 = scmp.ge.s32.totalorder %s228, 1
              %s233 = sphi %s4, %s4
              %s234 = sphi [#allocation5], [#allocation5]
            $region77: #{tpu_custom_call.1} parent=73 // loop_header_branch
              %231 = sbr.rel (%p229) target = $region81
            $region78: #{tpu_custom_call.1} parent=73 // loop_body
              %v235 = vld [vmem:[%s233] sm:%s226]
              %236 = vst [vmem:[%s234] sm:%s226] %v235
            $region79: #{tpu_custom_call.1} parent=73 // loop_footer
              %s232 = sadd.s32 1, %s228
            $region80: #{tpu_custom_call.1} parent=73 // loop_footer_branch
              %227 = sbr.rel target = $region76
            $region81: #{tpu_custom_call.1} parent=73 // loop_exit
              _
          $region74: #{tpu_custom_call.1} parent=27 // pred_fallthru
            _
          // Predicated region
          $region93: #{tpu_custom_call.1} parent=27 // pred_check
            _
          $region94: #{tpu_custom_call.1} parent=27 // pred_check_branch
            %260 = sbr.rel (0) target = $region96
          $region95: #{tpu_custom_call.1} parent=27 // pred_region
            %261 = vsyncadd %s217, 16
          $region96: #{tpu_custom_call.1} parent=27 // pred_fallthru
            _
          %s262 = smul.u32 4, 4
          %s263 = smul.u32 %s262, 48
          %s264 = smul.u32 %s263, 1
          %s265 = sshll.u32 %s264, 4
          %266 = dma.done [#allocation9], %s265
          %s267 = smul.u32 4, 1
          %s268 = smul.u32 %s267, 1
          %s269 = sshll.u32 %s268, 4
          %270 = dma.done %s160, %s269
          %s271 = smul.u32 %s267, 16
          %s272 = smul.u32 %s271, 1
          %s273 = sshll.u32 %s272, 4
          %274 = dma.done %s205, %s273
          %s275 = smul.u32 1, 1
          %s276 = smul.u32 %s275, 1
          %s277 = sshll.u32 %s276, 4
          %278 = dma.done %s217, %s277
          %279 = vst [vmem:[#allocation6] sm:$0xf] 0
          %280 = vst [vmem:[#allocation6 + $0x4] sm:$0xf] 0
          %281 = vst [vmem:[#allocation6 + $0x8] sm:$0xf] 0
          %282 = vst [vmem:[#allocation6 + $0xc] sm:$0xf] 0
          %283 = vst [vmem:[#allocation8] sm:$0xff] 0.0
        $region28: #{tpu_custom_call.1} parent=23 // pred_fallthru
          _
        %v284 = vld [vmem:[%s143] sm:$0xff]
        %vm285 = vcmask 31744
        %286 = vst.msk [vmem:[#allocation8] sm:$0xff] %vm285, %v284
        %v287 = vld [vmem:[#allocation8] sm:$0xff]
        %v288 = vpack.c.bf16 %v287, %v287
        %v289 = vld [vmem:[#allocation6] sm:$0xf]
        %290 = vst [vmem:[#allocation7] sm:$0xf] %v289
        %v292 = vrot.slane %v288, 4
        %294 = vst [vmem:[#allocation7] sm:$0xf0] %v292
        %v295 = vld [vmem:[#allocation7] sm:$0xf0]
        %v297 = vunpack.c.h.b16 %v295
        %v298 = vpack.c.b16 %v297, %v297
        %300 = vst [vmem:[#allocation6] sm:$0xf] %v298
        %v301 = vld [vmem:[#allocation7] sm:$0x78]
        %v302 = vld [vmem:[#allocation7] sm:$0xf8]
        %v303 = vld [vmem:[#allocation7] sm:$0xf0]
        %v305 = vshrl.u32 %v302, 16
        %v307 = vshll.u32 %v302, 16
        %v309 = vrot.slane %v307, 1
        %v310 = vor.u32 %v305, %v309
        %v312 = vrot.slane %v303, 1
        %v313 = vld [vmem:[#allocation2] sm:$0xff]
        %v314 = vld [vmem:[#allocation2 + $0x8] sm:$0xff]
        %v315 = vld [vmem:[#allocation2 + $0x10] sm:$0xff]
        %v316 = vld [vmem:[#allocation2 + $0x18] sm:$0xff]
        %v317 = vld [vmem:[#allocation2 + $0x20] sm:$0xff]
        %v318 = vld [vmem:[#allocation2 + $0x28] sm:$0xff]
        %v319 = vld [vmem:[#allocation2 + $0x30] sm:$0xff]
        %v320 = vld [vmem:[#allocation2 + $0x38] sm:$0xff]
        %v321 = vld [vmem:[#allocation2 + $0x40] sm:$0xff]
        %v322 = vld [vmem:[#allocation2 + $0x48] sm:$0xff]
        %v323 = vld [vmem:[#allocation2 + $0x50] sm:$0xff]
        %v324 = vld [vmem:[#allocation2 + $0x58] sm:$0xff]
        %v325 = vld [vmem:[#allocation2 + $0x60] sm:$0xff]
        %v326 = vld [vmem:[#allocation2 + $0x68] sm:$0xff]
        %v327 = vld [vmem:[#allocation2 + $0x70] sm:$0xff]
        %v328 = vld [vmem:[#allocation2 + $0x78] sm:$0xff]
        %v329 = vld [vmem:[#allocation2 + $0x80] sm:$0xff]
        %v330 = vld [vmem:[#allocation2 + $0x88] sm:$0xff]
        %v331 = vld [vmem:[#allocation2 + $0x90] sm:$0xff]
        %v332 = vld [vmem:[#allocation2 + $0x98] sm:$0xff]
        %v333 = vld [vmem:[#allocation2 + $0xa0] sm:$0xff]
        %v334 = vld [vmem:[#allocation2 + $0xa8] sm:$0xff]
        %v335 = vld [vmem:[#allocation2 + $0xb0] sm:$0xff]
        %v336 = vld [vmem:[#allocation2 + $0xb8] sm:$0xff]
        %v337 = vld [vmem:[#allocation3] sm:$0x1]
        %v339 = vlaneseq
        %v340 = vshrl.u32 %v339, 7
        %v341 = vsub.s32 0, %v340
        %v342 = vrot.slane %v337, %v341
        %v345 = vrot.slane %v301, 3
        %v346 = vrot.slane %v310, 3
        %v347 = vrot.slane %v312, 3
        %351 = vmatprep.subr.bf16.mxu0 0
        %352 = vmatpush1.bf16.msra.mxu0 %v313
        %353 = vmatprep.subr.bf16.mxu0 0
        %354 = vmatpush1.bf16.msra.mxu0 %v314
        %355 = vmatprep.subr.bf16.mxu0 0
        %356 = vmatpush1.bf16.msra.mxu0 %v315
        %357 = vmatprep.subr.bf16.mxu0 0
        %358 = vmatpush1.bf16.msra.mxu0 %v316
        %359 = vmatprep.subr.bf16.mxu0 0
        %360 = vmatpush1.bf16.msra.mxu0 %v317
        %361 = vmatprep.subr.bf16.mxu0 0
        %362 = vmatpush1.bf16.msra.mxu0 %v318
        %363 = vmatprep.subr.bf16.mxu0 0
        %364 = vmatpush1.bf16.msra.mxu0 %v319
        %365 = vmatprep.subr.bf16.mxu0 0
        %366 = vmatpush1.bf16.msra.mxu0 %v320
        %367 = vmatprep.subr.bf16.mxu0 0
        %368 = vmatpush1.bf16.msra.mxu0 %v321
        %369 = vmatprep.subr.bf16.mxu0 0
        %370 = vmatpush1.bf16.msra.mxu0 %v322
        %371 = vmatprep.subr.bf16.mxu0 0
        %372 = vmatpush1.bf16.msra.mxu0 %v323
        %373 = vmatprep.subr.bf16.mxu0 0
        %374 = vmatpush1.bf16.msra.mxu0 %v324
        %375 = vmatprep.subr.bf16.mxu0 0
        %376 = vmatpush1.bf16.msra.mxu0 %v325
        %377 = vmatprep.subr.bf16.mxu0 0
        %378 = vmatpush1.bf16.msra.mxu0 %v326
        %379 = vmatprep.subr.bf16.mxu0 0
        %380 = vmatpush1.bf16.msra.mxu0 %v327
        %381 = vmatprep.subr.bf16.mxu0 0
        %382 = vmatpush1.bf16.msra.mxu0 %v328
        %383 = vmatprep.mubr.bf16.mxu0 %v346
        %384 = vmatmul.mubr.bf16.gmra.mrb[0].mxu0 %v345
        %v385 = vpop.f32.mrb[0].mxu0
        %v386 = vadd.f32 %v342, %v385
        %v387 = vpop.f32.mrb[0].mxu0
        %v388 = vpop.f32.mrb[0].mxu0
        %v389 = vpop.f32.mrb[0].mxu0
        %390 = vdwg.mxu0
        %391 = vmatprep.subr.bf16.mxu0 0
        %392 = vmatpush1.bf16.msra.mxu0 %v329
        %393 = vmatprep.subr.bf16.mxu0 0
        %394 = vmatpush1.bf16.msra.mxu0 %v330
        %395 = vmatprep.subr.bf16.mxu0 0
        %396 = vmatpush1.bf16.msra.mxu0 %v331
        %397 = vmatprep.subr.bf16.mxu0 0
        %398 = vmatpush1.bf16.msra.mxu0 %v332
        %399 = vmatprep.subr.bf16.mxu0 0
        %400 = vmatpush1.bf16.msra.mxu0 %v333
        %401 = vmatprep.subr.bf16.mxu0 0
        %402 = vmatpush1.bf16.msra.mxu0 %v334
        %403 = vmatprep.subr.bf16.mxu0 0
        %404 = vmatpush1.bf16.msra.mxu0 %v335
        %405 = vmatprep.subr.bf16.mxu0 0
        %406 = vmatpush1.bf16.msra.mxu0 %v336
        %407 = vmatprep.subr.bf16.mxu0 0
        %408 = vmatpush1.bf16.msra.mxu0 0
        %409 = vmatprep.subr.bf16.mxu0 0
        %410 = vmatpush1.bf16.msra.mxu0 0
        %411 = vmatprep.subr.bf16.mxu0 0
        %412 = vmatpush1.bf16.msra.mxu0 0
        %413 = vmatprep.subr.bf16.mxu0 0
        %414 = vmatpush1.bf16.msra.mxu0 0
        %415 = vmatprep.subr.bf16.mxu0 0
        %416 = vmatpush1.bf16.msra.mxu0 0
        %417 = vmatprep.subr.bf16.mxu0 0
        %418 = vmatpush1.bf16.msra.mxu0 0
        %419 = vmatprep.subr.bf16.mxu0 0
        %420 = vmatpush1.bf16.msra.mxu0 0
        %421 = vmatprep.subr.bf16.mxu0 0
        %422 = vmatpush1.bf16.msra.mxu0 0
        %423 = vmatprep.mubr.bf16.mxu0 0
        %424 = vmatmul.mubr.bf16.gmra.mrb[0].mxu0 %v347
        %v425 = vpop.f32.mrb[0].mxu0
        %v426 = vadd.f32 %v386, %v425
        %v427 = vpop.f32.mrb[0].mxu0
        %v428 = vpop.f32.mrb[0].mxu0
        %v429 = vpop.f32.mrb[0].mxu0
        %430 = vdwg.mxu0
        %v431 = vmax.f32 %v426, 0.0
        %v432 = vpack.c.bf16 %v431, %v431
        %s433 = scalar_lea.vmem [#allocation6], 4
        %v434 = vld [vmem:[%s433] sm:$0xf]
        %435 = vst [vmem:[#allocation7] sm:$0xf] %v434
        %v437 = vrot.slane %v432, 4
        %439 = vst [vmem:[#allocation7] sm:$0xf0] %v437
        %v440 = vld [vmem:[#allocation7] sm:$0xf0]
        %v442 = vunpack.c.h.b16 %v440
        %v443 = vpack.c.b16 %v442, %v442
        %445 = vst [vmem:[%s433] sm:$0xf] %v443
        %v446 = vld [vmem:[#allocation7] sm:$0x78]
        %v447 = vld [vmem:[#allocation7] sm:$0xf8]
        %v448 = vld [vmem:[#allocation7] sm:$0xf0]
        %v450 = vshrl.u32 %v447, 16
        %v452 = vshll.u32 %v447, 16
        %v454 = vrot.slane %v452, 1
        %v455 = vor.u32 %v450, %v454
        %v457 = vrot.slane %v448, 1
        %s458 = scalar_lea.vmem [#allocation2], 192
        %v459 = vld [vmem:[%s458] sm:$0xff]
        %v460 = vld [vmem:[%s458 + $0x8] sm:$0xff]
        %v461 = vld [vmem:[%s458 + $0x10] sm:$0xff]
        %v462 = vld [vmem:[%s458 + $0x18] sm:$0xff]
        %v463 = vld [vmem:[%s458 + $0x20] sm:$0xff]
        %v464 = vld [vmem:[%s458 + $0x28] sm:$0xff]
        %v465 = vld [vmem:[%s458 + $0x30] sm:$0xff]
        %v466 = vld [vmem:[%s458 + $0x38] sm:$0xff]
        %v467 = vld [vmem:[%s458 + $0x40] sm:$0xff]
        %v468 = vld [vmem:[%s458 + $0x48] sm:$0xff]
        %v469 = vld [vmem:[%s458 + $0x50] sm:$0xff]
        %v470 = vld [vmem:[%s458 + $0x58] sm:$0xff]
        %v471 = vld [vmem:[%s458 + $0x60] sm:$0xff]
        %v472 = vld [vmem:[%s458 + $0x68] sm:$0xff]
        %v473 = vld [vmem:[%s458 + $0x70] sm:$0xff]
        %v474 = vld [vmem:[%s458 + $0x78] sm:$0xff]
        %v475 = vld [vmem:[%s458 + $0x80] sm:$0xff]
        %v476 = vld [vmem:[%s458 + $0x88] sm:$0xff]
        %v477 = vld [vmem:[%s458 + $0x90] sm:$0xff]
        %v478 = vld [vmem:[%s458 + $0x98] sm:$0xff]
        %v479 = vld [vmem:[%s458 + $0xa0] sm:$0xff]
        %v480 = vld [vmem:[%s458 + $0xa8] sm:$0xff]
        %v481 = vld [vmem:[%s458 + $0xb0] sm:$0xff]
        %v482 = vld [vmem:[%s458 + $0xb8] sm:$0xff]
        %s483 = scalar_lea.vmem [#allocation3], 1
        %v484 = vld [vmem:[%s483] sm:$0x1]
        %v486 = vlaneseq
        %v487 = vshrl.u32 %v486, 7
        %v488 = vsub.s32 0, %v487
        %v489 = vrot.slane %v484, %v488
        %v492 = vrot.slane %v446, 3
        %v493 = vrot.slane %v455, 3
        %v494 = vrot.slane %v457, 3
        %498 = vmatprep.subr.bf16.mxu0 0
        %499 = vmatpush1.bf16.msra.mxu0 %v459
        %500 = vmatprep.subr.bf16.mxu0 0
        %501 = vmatpush1.bf16.msra.mxu0 %v460
        %502 = vmatprep.subr.bf16.mxu0 0
        %503 = vmatpush1.bf16.msra.mxu0 %v461
        %504 = vmatprep.subr.bf16.mxu0 0
        %505 = vmatpush1.bf16.msra.mxu0 %v462
        %506 = vmatprep.subr.bf16.mxu0 0
        %507 = vmatpush1.bf16.msra.mxu0 %v463
        %508 = vmatprep.subr.bf16.mxu0 0
        %509 = vmatpush1.bf16.msra.mxu0 %v464
        %510 = vmatprep.subr.bf16.mxu0 0
        %511 = vmatpush1.bf16.msra.mxu0 %v465
        %512 = vmatprep.subr.bf16.mxu0 0
        %513 = vmatpush1.bf16.msra.mxu0 %v466
        %514 = vmatprep.subr.bf16.mxu0 0
        %515 = vmatpush1.bf16.msra.mxu0 %v467
        %516 = vmatprep.subr.bf16.mxu0 0
        %517 = vmatpush1.bf16.msra.mxu0 %v468
        %518 = vmatprep.subr.bf16.mxu0 0
        %519 = vmatpush1.bf16.msra.mxu0 %v469
        %520 = vmatprep.subr.bf16.mxu0 0
        %521 = vmatpush1.bf16.msra.mxu0 %v470
        %522 = vmatprep.subr.bf16.mxu0 0
        %523 = vmatpush1.bf16.msra.mxu0 %v471
        %524 = vmatprep.subr.bf16.mxu0 0
        %525 = vmatpush1.bf16.msra.mxu0 %v472
        %526 = vmatprep.subr.bf16.mxu0 0
        %527 = vmatpush1.bf16.msra.mxu0 %v473
        %528 = vmatprep.subr.bf16.mxu0 0
        %529 = vmatpush1.bf16.msra.mxu0 %v474
        %530 = vmatprep.mubr.bf16.mxu0 %v493
        %531 = vmatmul.mubr.bf16.gmra.mrb[0].mxu0 %v492
        %v532 = vpop.f32.mrb[0].mxu0
        %v533 = vadd.f32 %v489, %v532
        %v534 = vpop.f32.mrb[0].mxu0
        %v535 = vpop.f32.mrb[0].mxu0
        %v536 = vpop.f32.mrb[0].mxu0
        %537 = vdwg.mxu0
        %538 = vmatprep.subr.bf16.mxu0 0
        %539 = vmatpush1.bf16.msra.mxu0 %v475
        %540 = vmatprep.subr.bf16.mxu0 0
        %541 = vmatpush1.bf16.msra.mxu0 %v476
        %542 = vmatprep.subr.bf16.mxu0 0
        %543 = vmatpush1.bf16.msra.mxu0 %v477
        %544 = vmatprep.subr.bf16.mxu0 0
        %545 = vmatpush1.bf16.msra.mxu0 %v478
        %546 = vmatprep.subr.bf16.mxu0 0
        %547 = vmatpush1.bf16.msra.mxu0 %v479
        %548 = vmatprep.subr.bf16.mxu0 0
        %549 = vmatpush1.bf16.msra.mxu0 %v480
        %550 = vmatprep.subr.bf16.mxu0 0
        %551 = vmatpush1.bf16.msra.mxu0 %v481
        %552 = vmatprep.subr.bf16.mxu0 0
        %553 = vmatpush1.bf16.msra.mxu0 %v482
        %554 = vmatprep.subr.bf16.mxu0 0
        %555 = vmatpush1.bf16.msra.mxu0 0
        %556 = vmatprep.subr.bf16.mxu0 0
        %557 = vmatpush1.bf16.msra.mxu0 0
        %558 = vmatprep.subr.bf16.mxu0 0
        %559 = vmatpush1.bf16.msra.mxu0 0
        %560 = vmatprep.subr.bf16.mxu0 0
        %561 = vmatpush1.bf16.msra.mxu0 0
        %562 = vmatprep.subr.bf16.mxu0 0
        %563 = vmatpush1.bf16.msra.mxu0 0
        %564 = vmatprep.subr.bf16.mxu0 0
        %565 = vmatpush1.bf16.msra.mxu0 0
        %566 = vmatprep.subr.bf16.mxu0 0
        %567 = vmatpush1.bf16.msra.mxu0 0
        %568 = vmatprep.subr.bf16.mxu0 0
        %569 = vmatpush1.bf16.msra.mxu0 0
        %570 = vmatprep.mubr.bf16.mxu0 0
        %571 = vmatmul.mubr.bf16.gmra.mrb[0].mxu0 %v494
        %v572 = vpop.f32.mrb[0].mxu0
        %v573 = vadd.f32 %v533, %v572
        %v574 = vpop.f32.mrb[0].mxu0
        %v575 = vpop.f32.mrb[0].mxu0
        %v576 = vpop.f32.mrb[0].mxu0
        %577 = vdwg.mxu0
        %v578 = vmax.f32 %v573, 0.0
        %v579 = vld [vmem:[#allocation4] sm:$0xff]
        %v580 = vld [vmem:[#allocation4 + $0x8] sm:$0xff]
        %v581 = vld [vmem:[#allocation4 + $0x10] sm:$0xff]
        %v582 = vld [vmem:[#allocation4 + $0x18] sm:$0xff]
        %v583 = vld [vmem:[#allocation4 + $0x20] sm:$0xff]
        %v584 = vld [vmem:[#allocation4 + $0x28] sm:$0xff]
        %v585 = vld [vmem:[#allocation4 + $0x30] sm:$0xff]
        %v586 = vld [vmem:[#allocation4 + $0x38] sm:$0xff]
        %v587 = vld [vmem:[#allocation5] sm:$0x1]
        %v589 = vlaneseq
        %v590 = vshrl.u32 %v589, 7
        %v591 = vsub.s32 0, %v590
        %v592 = vrot.slane %v587, %v591
        %594 = vmatprep.subr.bf16.mxu0 0
        %595 = vmatpush1.bf16.msra.mxu0 %v579
        %596 = vmatprep.subr.bf16.mxu0 0
        %597 = vmatpush1.bf16.msra.mxu0 %v580
        %598 = vmatprep.subr.bf16.mxu0 0
        %599 = vmatpush1.bf16.msra.mxu0 %v581
        %600 = vmatprep.subr.bf16.mxu0 0
        %601 = vmatpush1.bf16.msra.mxu0 %v582
        %602 = vmatprep.subr.bf16.mxu0 0
        %603 = vmatpush1.bf16.msra.mxu0 %v583
        %604 = vmatprep.subr.bf16.mxu0 0
        %605 = vmatpush1.bf16.msra.mxu0 %v584
        %606 = vmatprep.subr.bf16.mxu0 0
        %607 = vmatpush1.bf16.msra.mxu0 %v585
        %608 = vmatprep.subr.bf16.mxu0 0
        %609 = vmatpush1.bf16.msra.mxu0 %v586
        %610 = vmatprep.subr.bf16.mxu0 0
        %611 = vmatpush1.bf16.msra.mxu0 0
        %612 = vmatprep.subr.bf16.mxu0 0
        %613 = vmatpush1.bf16.msra.mxu0 0
        %614 = vmatprep.subr.bf16.mxu0 0
        %615 = vmatpush1.bf16.msra.mxu0 0
        %616 = vmatprep.subr.bf16.mxu0 0
        %617 = vmatpush1.bf16.msra.mxu0 0
        %618 = vmatprep.subr.bf16.mxu0 0
        %619 = vmatpush1.bf16.msra.mxu0 0
        %620 = vmatprep.subr.bf16.mxu0 0
        %621 = vmatpush1.bf16.msra.mxu0 0
        %622 = vmatprep.subr.bf16.mxu0 0
        %623 = vmatpush1.bf16.msra.mxu0 0
        %624 = vmatprep.subr.bf16.mxu0 0
        %625 = vmatpush1.bf16.msra.mxu0 0
        %626 = vmatprep.mubr.bf16.mxu0 0
        %627 = vmatmul.mubr.bf16.gmra.mrb[0].mxu0 %v288
        %v628 = vpop.f32.mrb[0].mxu0
        %v629 = vadd.f32 %v592, %v628
        %v630 = vpop.f32.mrb[0].mxu0
        %v631 = vpop.f32.mrb[0].mxu0
        %v632 = vpop.f32.mrb[0].mxu0
        %633 = vdwg.mxu0
        %v634 = vadd.f32 %v578, %v629
        %v635 = vmax.f32 %v634, 0.0
        %v636 = vpack.c.bf16 %v635, %v635
        %s637 = scalar_lea.vmem [#allocation6], 8
        %v638 = vld [vmem:[%s637] sm:$0xf]
        %639 = vst [vmem:[#allocation7] sm:$0xf] %v638
        %v641 = vrot.slane %v636, 4
        %643 = vst [vmem:[#allocation7] sm:$0xf0] %v641
        %v644 = vld [vmem:[#allocation7] sm:$0xf0]
        %v646 = vunpack.c.h.b16 %v644
        %v647 = vpack.c.b16 %v646, %v646
        %649 = vst [vmem:[%s637] sm:$0xf] %v647
        %v650 = vld [vmem:[#allocation7] sm:$0x3c]
        %v651 = vld [vmem:[#allocation7] sm:$0x78]
        %v652 = vld [vmem:[#allocation7] sm:$0xf0]
        %v654 = vrot.slane %v651, 1
        %v656 = vrot.slane %v652, 2
        %s657 = scalar_lea.vmem [#allocation2], 384
        %v658 = vld [vmem:[%s657] sm:$0xff]
        %v659 = vld [vmem:[%s657 + $0x8] sm:$0xff]
        %v660 = vld [vmem:[%s657 + $0x10] sm:$0xff]
        %v661 = vld [vmem:[%s657 + $0x18] sm:$0xff]
        %v662 = vld [vmem:[%s657 + $0x20] sm:$0xff]
        %v663 = vld [vmem:[%s657 + $0x28] sm:$0xff]
        %v664 = vld [vmem:[%s657 + $0x30] sm:$0xff]
        %v665 = vld [vmem:[%s657 + $0x38] sm:$0xff]
        %v666 = vld [vmem:[%s657 + $0x40] sm:$0xff]
        %v667 = vld [vmem:[%s657 + $0x48] sm:$0xff]
        %v668 = vld [vmem:[%s657 + $0x50] sm:$0xff]
        %v669 = vld [vmem:[%s657 + $0x58] sm:$0xff]
        %v670 = vld [vmem:[%s657 + $0x60] sm:$0xff]
        %v671 = vld [vmem:[%s657 + $0x68] sm:$0xff]
        %v672 = vld [vmem:[%s657 + $0x70] sm:$0xff]
        %v673 = vld [vmem:[%s657 + $0x78] sm:$0xff]
        %v674 = vld [vmem:[%s657 + $0x80] sm:$0xff]
        %v675 = vld [vmem:[%s657 + $0x88] sm:$0xff]
        %v676 = vld [vmem:[%s657 + $0x90] sm:$0xff]
        %v677 = vld [vmem:[%s657 + $0x98] sm:$0xff]
        %v678 = vld [vmem:[%s657 + $0xa0] sm:$0xff]
        %v679 = vld [vmem:[%s657 + $0xa8] sm:$0xff]
        %v680 = vld [vmem:[%s657 + $0xb0] sm:$0xff]
        %v681 = vld [vmem:[%s657 + $0xb8] sm:$0xff]
        %s682 = scalar_lea.vmem [#allocation3], 2
        %v683 = vld [vmem:[%s682] sm:$0x1]
        %v685 = vlaneseq
        %v686 = vshrl.u32 %v685, 7
        %v687 = vsub.s32 0, %v686
        %v688 = vrot.slane %v683, %v687
        %v691 = vrot.slane %v650, 2
        %v692 = vrot.slane %v654, 2
        %v693 = vrot.slane %v656, 2
        %697 = vmatprep.subr.bf16.mxu0 0
        %698 = vmatpush1.bf16.msra.mxu0 %v658
        %699 = vmatprep.subr.bf16.mxu0 0
        %700 = vmatpush1.bf16.msra.mxu0 %v659
        %701 = vmatprep.subr.bf16.mxu0 0
        %702 = vmatpush1.bf16.msra.mxu0 %v660
        %703 = vmatprep.subr.bf16.mxu0 0
        %704 = vmatpush1.bf16.msra.mxu0 %v661
        %705 = vmatprep.subr.bf16.mxu0 0
        %706 = vmatpush1.bf16.msra.mxu0 %v662
        %707 = vmatprep.subr.bf16.mxu0 0
        %708 = vmatpush1.bf16.msra.mxu0 %v663
        %709 = vmatprep.subr.bf16.mxu0 0
        %710 = vmatpush1.bf16.msra.mxu0 %v664
        %711 = vmatprep.subr.bf16.mxu0 0
        %712 = vmatpush1.bf16.msra.mxu0 %v665
        %713 = vmatprep.subr.bf16.mxu0 0
        %714 = vmatpush1.bf16.msra.mxu0 %v666
        %715 = vmatprep.subr.bf16.mxu0 0
        %716 = vmatpush1.bf16.msra.mxu0 %v667
        %717 = vmatprep.subr.bf16.mxu0 0
        %718 = vmatpush1.bf16.msra.mxu0 %v668
        %719 = vmatprep.subr.bf16.mxu0 0
        %720 = vmatpush1.bf16.msra.mxu0 %v669
        %721 = vmatprep.subr.bf16.mxu0 0
        %722 = vmatpush1.bf16.msra.mxu0 %v670
        %723 = vmatprep.subr.bf16.mxu0 0
        %724 = vmatpush1.bf16.msra.mxu0 %v671
        %725 = vmatprep.subr.bf16.mxu0 0
        %726 = vmatpush1.bf16.msra.mxu0 %v672
        %727 = vmatprep.subr.bf16.mxu0 0
        %728 = vmatpush1.bf16.msra.mxu0 %v673
        %729 = vmatprep.mubr.bf16.mxu0 %v692
        %730 = vmatmul.mubr.bf16.gmra.mrb[0].mxu0 %v691
        %v731 = vpop.f32.mrb[0].mxu0
        %v732 = vadd.f32 %v688, %v731
        %v733 = vpop.f32.mrb[0].mxu0
        %v734 = vpop.f32.mrb[0].mxu0
        %v735 = vpop.f32.mrb[0].mxu0
        %736 = vdwg.mxu0
        %737 = vmatprep.subr.bf16.mxu0 0
        %738 = vmatpush1.bf16.msra.mxu0 %v674
        %739 = vmatprep.subr.bf16.mxu0 0
        %740 = vmatpush1.bf16.msra.mxu0 %v675
        %741 = vmatprep.subr.bf16.mxu0 0
        %742 = vmatpush1.bf16.msra.mxu0 %v676
        %743 = vmatprep.subr.bf16.mxu0 0
        %744 = vmatpush1.bf16.msra.mxu0 %v677
        %745 = vmatprep.subr.bf16.mxu0 0
        %746 = vmatpush1.bf16.msra.mxu0 %v678
        %747 = vmatprep.subr.bf16.mxu0 0
        %748 = vmatpush1.bf16.msra.mxu0 %v679
        %749 = vmatprep.subr.bf16.mxu0 0
        %750 = vmatpush1.bf16.msra.mxu0 %v680
        %751 = vmatprep.subr.bf16.mxu0 0
        %752 = vmatpush1.bf16.msra.mxu0 %v681
        %753 = vmatprep.subr.bf16.mxu0 0
        %754 = vmatpush1.bf16.msra.mxu0 0
        %755 = vmatprep.subr.bf16.mxu0 0
        %756 = vmatpush1.bf16.msra.mxu0 0
        %757 = vmatprep.subr.bf16.mxu0 0
        %758 = vmatpush1.bf16.msra.mxu0 0
        %759 = vmatprep.subr.bf16.mxu0 0
        %760 = vmatpush1.bf16.msra.mxu0 0
        %761 = vmatprep.subr.bf16.mxu0 0
        %762 = vmatpush1.bf16.msra.mxu0 0
        %763 = vmatprep.subr.bf16.mxu0 0
        %764 = vmatpush1.bf16.msra.mxu0 0
        %765 = vmatprep.subr.bf16.mxu0 0
        %766 = vmatpush1.bf16.msra.mxu0 0
        %767 = vmatprep.subr.bf16.mxu0 0
        %768 = vmatpush1.bf16.msra.mxu0 0
        %769 = vmatprep.mubr.bf16.mxu0 0
        %770 = vmatmul.mubr.bf16.gmra.mrb[0].mxu0 %v693
        %v771 = vpop.f32.mrb[0].mxu0
        %v772 = vadd.f32 %v732, %v771
        %v773 = vpop.f32.mrb[0].mxu0
        %v774 = vpop.f32.mrb[0].mxu0
        %v775 = vpop.f32.mrb[0].mxu0
        %776 = vdwg.mxu0
        %v777 = vmax.f32 %v772, 0.0
        %v778 = vpack.c.bf16 %v777, %v777
        %s779 = scalar_lea.vmem [#allocation6], 12
        %v780 = vld [vmem:[%s779] sm:$0xf]
        %781 = vst [vmem:[#allocation7] sm:$0xf] %v780
        %v783 = vrot.slane %v778, 4
        %785 = vst [vmem:[#allocation7] sm:$0xf0] %v783
        %v786 = vld [vmem:[#allocation7] sm:$0xf0]
        %v788 = vunpack.c.h.b16 %v786
        %v789 = vpack.c.b16 %v788, %v788
        %791 = vst [vmem:[%s779] sm:$0xf] %v789
        %v792 = vld [vmem:[#allocation7] sm:$0x3c]
        %v793 = vld [vmem:[#allocation7] sm:$0x78]
        %v794 = vld [vmem:[#allocation7] sm:$0xf0]
        %v796 = vrot.slane %v793, 1
        %v798 = vrot.slane %v794, 2
        %s799 = scalar_lea.vmem [#allocation2], 576
        %v800 = vld [vmem:[%s799] sm:$0xff]
        %v801 = vld [vmem:[%s799 + $0x8] sm:$0xff]
        %v802 = vld [vmem:[%s799 + $0x10] sm:$0xff]
        %v803 = vld [vmem:[%s799 + $0x18] sm:$0xff]
        %v804 = vld [vmem:[%s799 + $0x20] sm:$0xff]
        %v805 = vld [vmem:[%s799 + $0x28] sm:$0xff]
        %v806 = vld [vmem:[%s799 + $0x30] sm:$0xff]
        %v807 = vld [vmem:[%s799 + $0x38] sm:$0xff]
        %v808 = vld [vmem:[%s799 + $0x40] sm:$0xff]
        %v809 = vld [vmem:[%s799 + $0x48] sm:$0xff]
        %v810 = vld [vmem:[%s799 + $0x50] sm:$0xff]
        %v811 = vld [vmem:[%s799 + $0x58] sm:$0xff]
        %v812 = vld [vmem:[%s799 + $0x60] sm:$0xff]
        %v813 = vld [vmem:[%s799 + $0x68] sm:$0xff]
        %v814 = vld [vmem:[%s799 + $0x70] sm:$0xff]
        %v815 = vld [vmem:[%s799 + $0x78] sm:$0xff]
        %v816 = vld [vmem:[%s799 + $0x80] sm:$0xff]
        %v817 = vld [vmem:[%s799 + $0x88] sm:$0xff]
        %v818 = vld [vmem:[%s799 + $0x90] sm:$0xff]
        %v819 = vld [vmem:[%s799 + $0x98] sm:$0xff]
        %v820 = vld [vmem:[%s799 + $0xa0] sm:$0xff]
        %v821 = vld [vmem:[%s799 + $0xa8] sm:$0xff]
        %v822 = vld [vmem:[%s799 + $0xb0] sm:$0xff]
        %v823 = vld [vmem:[%s799 + $0xb8] sm:$0xff]
        %s824 = scalar_lea.vmem [#allocation3], 3
        %v825 = vld [vmem:[%s824] sm:$0x1]
        %v827 = vlaneseq
        %v828 = vshrl.u32 %v827, 7
        %v829 = vsub.s32 0, %v828
        %v830 = vrot.slane %v825, %v829
        %v833 = vrot.slane %v792, 2
        %v834 = vrot.slane %v796, 2
        %v835 = vrot.slane %v798, 2
        %839 = vmatprep.subr.bf16.mxu0 0
        %840 = vmatpush1.bf16.msra.mxu0 %v800
        %841 = vmatprep.subr.bf16.mxu0 0
        %842 = vmatpush1.bf16.msra.mxu0 %v801
        %843 = vmatprep.subr.bf16.mxu0 0
        %844 = vmatpush1.bf16.msra.mxu0 %v802
        %845 = vmatprep.subr.bf16.mxu0 0
        %846 = vmatpush1.bf16.msra.mxu0 %v803
        %847 = vmatprep.subr.bf16.mxu0 0
        %848 = vmatpush1.bf16.msra.mxu0 %v804
        %849 = vmatprep.subr.bf16.mxu0 0
        %850 = vmatpush1.bf16.msra.mxu0 %v805
        %851 = vmatprep.subr.bf16.mxu0 0
        %852 = vmatpush1.bf16.msra.mxu0 %v806
        %853 = vmatprep.subr.bf16.mxu0 0
        %854 = vmatpush1.bf16.msra.mxu0 %v807
        %855 = vmatprep.subr.bf16.mxu0 0
        %856 = vmatpush1.bf16.msra.mxu0 %v808
        %857 = vmatprep.subr.bf16.mxu0 0
        %858 = vmatpush1.bf16.msra.mxu0 %v809
        %859 = vmatprep.subr.bf16.mxu0 0
        %860 = vmatpush1.bf16.msra.mxu0 %v810
        %861 = vmatprep.subr.bf16.mxu0 0
        %862 = vmatpush1.bf16.msra.mxu0 %v811
        %863 = vmatprep.subr.bf16.mxu0 0
        %864 = vmatpush1.bf16.msra.mxu0 %v812
        %865 = vmatprep.subr.bf16.mxu0 0
        %866 = vmatpush1.bf16.msra.mxu0 %v813
        %867 = vmatprep.subr.bf16.mxu0 0
        %868 = vmatpush1.bf16.msra.mxu0 %v814
        %869 = vmatprep.subr.bf16.mxu0 0
        %870 = vmatpush1.bf16.msra.mxu0 %v815
        %871 = vmatprep.mubr.bf16.mxu0 %v834
        %872 = vmatmul.mubr.bf16.gmra.mrb[0].mxu0 %v833
        %v873 = vpop.f32.mrb[0].mxu0
        %v874 = vadd.f32 %v830, %v873
        %v875 = vpop.f32.mrb[0].mxu0
        %v876 = vpop.f32.mrb[0].mxu0
        %v877 = vpop.f32.mrb[0].mxu0
        %878 = vdwg.mxu0
        %879 = vmatprep.subr.bf16.mxu0 0
        %880 = vmatpush1.bf16.msra.mxu0 %v816
        %881 = vmatprep.subr.bf16.mxu0 0
        %882 = vmatpush1.bf16.msra.mxu0 %v817
        %883 = vmatprep.subr.bf16.mxu0 0
        %884 = vmatpush1.bf16.msra.mxu0 %v818
        %885 = vmatprep.subr.bf16.mxu0 0
        %886 = vmatpush1.bf16.msra.mxu0 %v819
        %887 = vmatprep.subr.bf16.mxu0 0
        %888 = vmatpush1.bf16.msra.mxu0 %v820
        %889 = vmatprep.subr.bf16.mxu0 0
        %890 = vmatpush1.bf16.msra.mxu0 %v821
        %891 = vmatprep.subr.bf16.mxu0 0
        %892 = vmatpush1.bf16.msra.mxu0 %v822
        %893 = vmatprep.subr.bf16.mxu0 0
        %894 = vmatpush1.bf16.msra.mxu0 %v823
        %895 = vmatprep.subr.bf16.mxu0 0
        %896 = vmatpush1.bf16.msra.mxu0 0
        %897 = vmatprep.subr.bf16.mxu0 0
        %898 = vmatpush1.bf16.msra.mxu0 0
        %899 = vmatprep.subr.bf16.mxu0 0
        %900 = vmatpush1.bf16.msra.mxu0 0
        %901 = vmatprep.subr.bf16.mxu0 0
        %902 = vmatpush1.bf16.msra.mxu0 0
        %903 = vmatprep.subr.bf16.mxu0 0
        %904 = vmatpush1.bf16.msra.mxu0 0
        %905 = vmatprep.subr.bf16.mxu0 0
        %906 = vmatpush1.bf16.msra.mxu0 0
        %907 = vmatprep.subr.bf16.mxu0 0
        %908 = vmatpush1.bf16.msra.mxu0 0
        %909 = vmatprep.subr.bf16.mxu0 0
        %910 = vmatpush1.bf16.msra.mxu0 0
        %911 = vmatprep.mubr.bf16.mxu0 0
        %912 = vmatmul.mubr.bf16.gmra.mrb[0].mxu0 %v835
        %v913 = vpop.f32.mrb[0].mxu0
        %v914 = vadd.f32 %v874, %v913
        %v915 = vpop.f32.mrb[0].mxu0
        %v916 = vpop.f32.mrb[0].mxu0
        %v917 = vpop.f32.mrb[0].mxu0
        %918 = vdwg.mxu0
        %v919 = vmax.f32 %v914, 0.0
        %v920 = vadd.f32 %v919, %v635
        %v921 = vmax.f32 %v920, 0.0
        %v922 = vpack.c.bf16 %v921, %v921
        %923 = vst [vmem:[%s135] sm:$0xf] %v922
        %s924 = sand.u32 %s69, 1
        %s925 = scalar_lea.sflag [#allocation11], %s924
        %s926 = sand.u32 %s69, 1
        %s927 = smul.addr %s926, 4
        %s928 = scalar_lea.vmem [#allocation10], %s927
        // Predicated region
        $region97: #{tpu_custom_call.1} parent=23 // pred_check
          %p929 = pneg %p79
        $region98: #{tpu_custom_call.1} parent=23 // pred_check_branch
          %931 = sbr.rel (%p929) target = $region100
        $region99: #{tpu_custom_call.1} parent=23 // pred_region
          %s933 = ssub.s32 64, 64
          %934 = vsyncadd %s925, %s933
          %s935 = smul.addr %s23, 2
          %s936 = sadd.s32 %s24, %s935
          %s937 = smul.addr %s936, 64
          %s938 = scalar_lea.hbm %s5, %s937
          %s940 = sshll.u32 %s928, 4
          %s941 = int_to_ptr.vmem [resolvable:$true] %s940
          %943 = dma.vmem_to_hbm [thread:$0]  %s941, 64, %s938, %s925
        $region100: #{tpu_custom_call.1} parent=23 // pred_fallthru
          _
      $region24: #{tpu_custom_call.1} parent=5 // pred_fallthru
        _
      %p944 = scmp.le.s32.totalorder 2, %s14
      // Predicated region
      $region101: #{tpu_custom_call.1} parent=5 // pred_check
        %p945 = pneg %p944
      $region102: #{tpu_custom_call.1} parent=5 // pred_check_branch
        %947 = sbr.rel (%p945) target = $region104
      $region103: #{tpu_custom_call.1} parent=5 // pred_region
        %s948 = ssub.s32 %s14, 2
        // Predicated region
        $region105: #{tpu_custom_call.1} parent=103 // pred_check
          %p949 = pneg %p85
        $region106: #{tpu_custom_call.1} parent=103 // pred_check_branch
          %951 = sbr.rel (%p949) target = $region108
        $region107: #{tpu_custom_call.1} parent=103 // pred_region
          %s952 = sand.u32 %s70, 1
          %s953 = scalar_lea.sflag [#allocation11], %s952
          %s954 = sand.u32 %s70, 1
          %s955 = smul.addr %s954, 4
          %s956 = scalar_lea.vmem [#allocation10], %s955
          %957 = dma.done %s953, 64
        $region108: #{tpu_custom_call.1} parent=103 // pred_fallthru
          _
      $region104: #{tpu_custom_call.1} parent=5 // pred_fallthru
        _
    $region6: #{tpu_custom_call.1} parent=1 // loop_footer
      %s18 = sadd.s32 1, %s14
    $region7: #{tpu_custom_call.1} parent=1 // loop_footer_branch
      %13 = sbr.rel target = $region3
    $region8: #{tpu_custom_call.1} parent=1 // loop_exit
      _
    %958 = vsyncpa [#allocation11], 1
    %s959 = scalar_lea.sflag [#allocation11], 1
    %960 = vsyncpa %s959, 1
  %961 = vsyncmov [#allocation9]
  %s962 = vpop.sfrf %961
  %p963 = scmp.eq.s32.totalorder %s962, 0
  %p964 = pneg %p963
  %966 = shalt.err (%p964)
  %s967 = scalar_lea.sflag [#allocation9], 1
  %968 = vsyncmov %s967
  %s969 = vpop.sfrf %968
  %p970 = scmp.eq.s32.totalorder %s969, 0
  %p971 = pneg %p970
  %973 = shalt.err (%p971)
  %s974 = scalar_lea.sflag [#allocation9], 2
  %975 = vsyncmov %s974
  %s976 = vpop.sfrf %975
  %p977 = scmp.eq.s32.totalorder %s976, 0
  %p978 = pneg %p977
  %980 = shalt.err (%p978)
  %s981 = scalar_lea.sflag [#allocation9], 3
  %982 = vsyncmov %s981
  %s983 = vpop.sfrf %982
  %p984 = scmp.eq.s32.totalorder %s983, 0
  %p985 = pneg %p984
  %987 = shalt.err (%p985)

</llo_original>
